<compile_context>
chip_gen: v7x
topology: tpu7x:2x2x1
jax: 0.10.0
libtpu: 0.0.40
codegen_flags: <defaults>
</compile_context>

<pallas_src>
import jax
import jax.numpy as jnp
from jax import lax
from jax.experimental import pallas as pl
from jax.experimental.pallas import tpu as pltpu

# 3x3 kernel offsets, kh-major / kw-minor (matches OIHW weight layout).
OFFSETS = tuple((dy, dx) for dy in (-1, 0, 1) for dx in (-1, 0, 1))
CENTER = OFFSETS.index((0, 0))                                   # == 4
# row in the (8, L) mask array for each non-center tap
MASK_ROW = {k: (k if k < CENTER else k - 1) for k in range(9) if k != CENTER}


def _per_offset(w):
    """(Cout, Cin, 3, 3) -> (9, Cout, Cin), offset order == OFFSETS."""
    co, ci, kh, kw = w.shape
    return jnp.transpose(w, (2, 3, 0, 1)).reshape(kh * kw, co, ci)


def _stack_taps(w_taps, bias):
    """(9, Cout, Cin), (Cout,) -> (Cout, 9*Cin + 1): tap-major columns + bias col."""
    co = w_taps.shape[1]
    flat = jnp.transpose(w_taps, (1, 0, 2)).reshape(co, -1)      # col k*Cin + c
    return jnp.concatenate([flat, bias.reshape(co, 1)], axis=1).astype(jnp.float32)


def _build_masks(H, W, nb):
    """(8, nb*H*W) 0/1 float: validity of each non-center tap per flattened pos."""
    hh = jnp.arange(H, dtype=jnp.int32)[:, None]
    ww = jnp.arange(W, dtype=jnp.int32)[None, :]
    rows = []
    for dy, dx in OFFSETS:
        if dy == 0 and dx == 0:
            continue
        valid = ((hh + dy >= 0) & (hh + dy < H) &
                 (ww + dx >= 0) & (ww + dx < W))
        rows.append(valid.astype(jnp.float32).reshape(H * W))
    return jnp.tile(jnp.stack(rows, axis=0), (1, nb))            # (8, L)


def _make_kernel(W, L):
    PAD = W + 1                                                  # halo on each side
    offs = [dy * W + dx for (dy, dx) in OFFSETS]

    def kernel(x_ref, m_ref, w1_ref, w2_ref, w34_ref, w56_ref, o_ref, pad_ref):
        # Keep only the halo lanes zeroed (== conv zero padding); the interior is
        # fully overwritten before every read.  Re-done each step -> megacore-safe.
        zhalo = jnp.zeros((16, PAD), jnp.float32)
        pad_ref[pl.ds(0, 16), pl.ds(0, PAD)] = zhalo
        pad_ref[pl.ds(0, 16), pl.ds(PAD + L, PAD)] = zhalo

        ones = jnp.ones((1, L), jnp.float32)                     # bias row

        def stash(v):                                            # activation -> interior
            pad_ref[pl.ds(0, v.shape[0]), pl.ds(PAD, L)] = v

        def stacked(rows):
            """(9*rows + 1, L): masked taps stacked on the contraction dim + ones."""
            parts = []
            for k in range(9):
                v = pad_ref[pl.ds(0, rows), pl.ds(PAD + offs[k], L)]
                if k != CENTER:                                  # image/batch boundaries
                    v = v * m_ref[pl.ds(MASK_ROW[k], 1), :]
                parts.append(v)
            parts.append(ones)
            return jnp.concatenate(parts, axis=0)

        # ---- conv1 : 1 -> 8                         (8,10) x (10,L) on the MXU
        stash(x_ref[...])
        x1 = jnp.dot(w1_ref[...], stacked(1), preferred_element_type=jnp.float32)

        # ---- a = x1 + conv2(x1)                     identity folded into center tap
        stash(x1)
        a = jnp.dot(w2_ref[...], stacked(8), preferred_element_type=jnp.float32)

        # ---- [x_1 ; x_2] = [a+conv3(a) ; a+conv4(a)] fused 8 -> 16, identities folded
        stash(a)
        x12 = jnp.dot(w34_ref[...], stacked(8), preferred_element_type=jnp.float32)

        # ---- out = conv5(x_1) + conv6(x_2)           fused 16 -> 1
        stash(x12)
        o_ref[...] = jnp.dot(w56_ref[...], stacked(16),
                             preferred_element_type=jnp.float32)

    return kernel


def eltwise_combination_forward(x_nchw, params, samples_per_step=None):
    """Forward pass of TestModelEltwiseCombination as one Pallas TPU kernel."""
    (w1, b1, w2, b2, w3, b3, w4, b4, w5, b5, w6, b6) = params
    N, cin, H, W = x_nchw.shape
    assert cin == 1, "model expects a single input channel"
    HW = H * W

    if samples_per_step is None:
        # Smallest divisor of N whose lane block is 128-aligned -> lane-dense I/O and
        # the most grid steps (so both v7x TensorCores get work).
        nb = next((d for d in range(1, N + 1)
                   if N % d == 0 and (d * HW) % 128 == 0), None)
    else:
        nb = samples_per_step
    assert nb is not None and N % nb == 0 and (nb * HW) % 128 == 0, (
        "per-step lane block must be a multiple of 128")
    # TODO(synk): if H*W has no 128-aligned multiple dividing the batch, pad the
    # flattened batch*spatial axis and mask the tail instead of asserting.

    L = nb * HW
    PAD = W + 1

    x_flat = x_nchw.astype(jnp.float32).reshape(1, N * HW)
    masks = _build_masks(H, W, nb)

    # Pre-stacked per-stage weights (taps on the contraction dim, bias column,
    # residual identities folded into the center tap).  Done once, tiny.
    eye8 = jnp.eye(8, dtype=jnp.float32)
    w1t = _per_offset(w1.astype(jnp.float32))                              # (9, 8, 1)
    w2t = _per_offset(w2.astype(jnp.float32)).at[CENTER].add(eye8)         # a = x1 + conv2(x1)
    w3t = _per_offset(w3.astype(jnp.float32)).at[CENTER].add(eye8)         # x_1 = a + conv3(a)
    w4t = _per_offset(w4.astype(jnp.float32)).at[CENTER].add(eye8)         # x_2 = a + conv4(a)
    w34t = jnp.concatenate([w3t, w4t], axis=1)                             # (9, 16, 8)
    w56t = jnp.concatenate([_per_offset(w5.astype(jnp.float32)),
                            _per_offset(w6.astype(jnp.float32))], axis=2)  # (9, 1, 16)

    w1s = _stack_taps(w1t, b1)                               # (8, 10)
    w2s = _stack_taps(w2t, b2)                               # (8, 73)
    w34s = _stack_taps(w34t, jnp.concatenate([b3, b4]))      # (16, 73)
    w56s = _stack_taps(w56t, b5 + b6)                        # (1, 145)

    kernel = _make_kernel(W, L)

    out = pl.pallas_call(
        kernel,
        out_shape=jax.ShapeDtypeStruct((1, N * HW), jnp.float32),
        grid_spec=pltpu.PrefetchScalarGridSpec(
            num_scalar_prefetch=0,
            grid=(N // nb,),
            in_specs=[
                pl.BlockSpec((1, L), lambda i: (0, i)),      # x (batch+spatial on lanes)
                pl.BlockSpec((8, L), lambda i: (0, 0)),      # non-center tap masks
                pl.BlockSpec((8, 10), lambda i: (0, 0)),     # conv1 stacked weights
                pl.BlockSpec((8, 73), lambda i: (0, 0)),     # conv2 (+I) stacked weights
                pl.BlockSpec((16, 73), lambda i: (0, 0)),    # conv3|conv4 (+I) stacked
                pl.BlockSpec((1, 145), lambda i: (0, 0)),    # conv5|conv6 stacked
            ],
            out_specs=pl.BlockSpec((1, L), lambda i: (0, i)),
            scratch_shapes=[
                pltpu.VMEM((16, L + 2 * PAD), jnp.float32),  # zero-haloed stash
            ],
        ),
        compiler_params=pltpu.CompilerParams(
            dimension_semantics=("parallel",),
            vmem_limit_bytes=32 * 1024 * 1024,
        ),
    )(x_flat, masks, w1s, w2s, w34s, w56s)

    return out.reshape(N, 1, H, W)


def _reference(x, params):
    """Pure-JAX reference of the PyTorch forward."""
    (w1, b1, w2, b2, w3, b3, w4, b4, w5, b5, w6, b6) = params

    def conv(v, w, b):
        y = lax.conv_general_dilated(
            v, w, window_strides=(1, 1), padding=((1, 1), (1, 1)),
            dimension_numbers=("NCHW", "OIHW", "NCHW"),
            precision=lax.Precision.HIGHEST)
        return y + b.reshape(1, -1, 1, 1)

    t = conv(x, w1, b1)
    t = t + conv(t, w2, b2)
    t1 = t + conv(t, w3, b3)
    t2 = t + conv(t, w4, b4)
    return conv(t1, w5, b5) + conv(t2, w6, b6)


if __name__ == "__main__":
    N, H, W = 2, 16, 16

    def make_conv(cin, cout, w_init, b_init):
        # mirrors create_conv / fill_conv_weight: constant fill + eye(3) on each 3x3
        w = jnp.full((cout, cin, 3, 3), float(w_init), jnp.float32)
        w = w + jnp.eye(3, dtype=jnp.float32)
        b = jnp.full((cout,), float(b_init), jnp.float32)
        return w, b

    w1, b1 = make_conv(1, 8, 1, -2)
    w2, b2 = make_conv(8, 8, 2, -2)
    w3, b3 = make_conv(8, 8, 3, -2)
    w4, b4 = make_conv(8, 8, 10, 0)
    w5, b5 = make_conv(8, 1, -10, 0)
    w6, b6 = make_conv(8, 1, -10, 0)
    params = (w1, b1, w2, b2, w3, b3, w4, b4, w5, b5, w6, b6)

    x = jax.random.normal(jax.random.PRNGKey(0), (N, 1, H, W), dtype=jnp.float32)

    out = eltwise_combination_forward(x, params)
    out = jax.block_until_ready(out)

    ref = _reference(x, params)
    assert out.shape == (N, 1, H, W)
    rel_err = float(jnp.max(jnp.abs(out - ref)) / (jnp.max(jnp.abs(ref)) + 1e-6))
    assert rel_err < 1e-3, f"relative error too large: {rel_err}"

    print("KERNEL_OK")
</pallas_src>

<mosaic_0001>
module attributes {stable_mosaic.version = 11 : i64} {
  func.func @kernel(%arg0: i32, %arg1: memref<1x256xf32, #tpu.memory_space<vmem>>, %arg2: memref<8x256xf32, #tpu.memory_space<vmem>>, %arg3: memref<8x10xf32, #tpu.memory_space<vmem>>, %arg4: memref<8x73xf32, #tpu.memory_space<vmem>>, %arg5: memref<16x73xf32, #tpu.memory_space<vmem>>, %arg6: memref<1x145xf32, #tpu.memory_space<vmem>>, %arg7: memref<1x256xf32, #tpu.memory_space<vmem>>, %arg8: memref<16x290xf32, #tpu.memory_space<vmem>>) attributes {dimension_semantics = [#tpu.dimension_semantics<parallel>], iteration_bounds = array<i64: 2>, scalar_prefetch = 0 : i64, scratch_operands = 1 : i64, tpu.core_type = #tpu.core_type<tc>, window_params = [{transform_indices = @transform_0, window_bounds = array<i64: 1, 256>}, {pipeline_mode = #tpu.pipeline_mode<synchronous>, transform_indices = @transform_1, window_bounds = array<i64: 8, 256>}, {pipeline_mode = #tpu.pipeline_mode<synchronous>, transform_indices = @transform_2, window_bounds = array<i64: 8, 10>}, {pipeline_mode = #tpu.pipeline_mode<synchronous>, transform_indices = @transform_3, window_bounds = array<i64: 8, 73>}, {pipeline_mode = #tpu.pipeline_mode<synchronous>, transform_indices = @transform_4, window_bounds = array<i64: 16, 73>}, {pipeline_mode = #tpu.pipeline_mode<synchronous>, transform_indices = @transform_5, window_bounds = array<i64: 1, 145>}, {transform_indices = @transform_6, window_bounds = array<i64: 1, 256>}]} {
    %cst = arith.constant 0.000000e+00 : f32
    %0 = vector.broadcast %cst : f32 to vector<16x17xf32>
    %c0 = arith.constant 0 : index
    %c0_0 = arith.constant 0 : index
    %1 = vector.load %arg8[%c0, %c0_0] : memref<16x290xf32, #tpu.memory_space<vmem>>, vector<16x17xf32>
    tpu.vector_store %arg8[%c0, %c0_0], %0 {strides = array<i32>} : memref<16x290xf32, #tpu.memory_space<vmem>>, vector<16x17xf32>,
    %c0_1 = arith.constant 0 : index
    %c273 = arith.constant 273 : index
    %2 = vector.load %arg8[%c0_1, %c273] : memref<16x290xf32, #tpu.memory_space<vmem>>, vector<16x17xf32>
    tpu.vector_store %arg8[%c0_1, %c273], %0 {strides = array<i32>} : memref<16x290xf32, #tpu.memory_space<vmem>>, vector<16x17xf32>,
    %cst_2 = arith.constant 1.000000e+00 : f32
    %3 = vector.broadcast %cst_2 : f32 to vector<1x256xf32>
    %c0_3 = arith.constant 0 : index
    %c0_4 = arith.constant 0 : index
    %4 = vector.load %arg1[%c0_3, %c0_4] : memref<1x256xf32, #tpu.memory_space<vmem>>, vector<1x256xf32>
    %c0_5 = arith.constant 0 : index
    %c17 = arith.constant 17 : index
    %5 = vector.load %arg8[%c0_5, %c17] : memref<16x290xf32, #tpu.memory_space<vmem>>, vector<1x256xf32>
    tpu.vector_store %arg8[%c0_5, %c17], %4 {strides = array<i32>} : memref<16x290xf32, #tpu.memory_space<vmem>>, vector<1x256xf32>,
    %c0_6 = arith.constant 0 : index
    %c0_7 = arith.constant 0 : index
    %6 = vector.load %arg3[%c0_6, %c0_7] : memref<8x10xf32, #tpu.memory_space<vmem>>, vector<8x10xf32>
    %c0_8 = arith.constant 0 : index
    %c0_9 = arith.constant 0 : index
    %7 = vector.load %arg8[%c0_8, %c0_9] : memref<16x290xf32, #tpu.memory_space<vmem>>, vector<1x256xf32>
    %c0_10 = arith.constant 0 : index
    %c0_11 = arith.constant 0 : index
    %8 = vector.load %arg2[%c0_10, %c0_11] : memref<8x256xf32, #tpu.memory_space<vmem>>, vector<1x256xf32>
    %9 = arith.mulf %7, %8 : vector<1x256xf32>
    %c0_12 = arith.constant 0 : index
    %c1 = arith.constant 1 : index
    %10 = vector.load %arg8[%c0_12, %c1] : memref<16x290xf32, #tpu.memory_space<vmem>>, vector<1x256xf32>
    %c1_13 = arith.constant 1 : index
    %c0_14 = arith.constant 0 : index
    %11 = vector.load %arg2[%c1_13, %c0_14] : memref<8x256xf32, #tpu.memory_space<vmem>>, vector<1x256xf32>
    %12 = arith.mulf %10, %11 : vector<1x256xf32>
    %c0_15 = arith.constant 0 : index
    %c2 = arith.constant 2 : index
    %13 = vector.load %arg8[%c0_15, %c2] : memref<16x290xf32, #tpu.memory_space<vmem>>, vector<1x256xf32>
    %c2_16 = arith.constant 2 : index
    %c0_17 = arith.constant 0 : index
    %14 = vector.load %arg2[%c2_16, %c0_17] : memref<8x256xf32, #tpu.memory_space<vmem>>, vector<1x256xf32>
    %15 = arith.mulf %13, %14 : vector<1x256xf32>
    %c0_18 = arith.constant 0 : index
    %c16 = arith.constant 16 : index
    %16 = vector.load %arg8[%c0_18, %c16] : memref<16x290xf32, #tpu.memory_space<vmem>>, vector<1x256xf32>
    %c3 = arith.constant 3 : index
    %c0_19 = arith.constant 0 : index
    %17 = vector.load %arg2[%c3, %c0_19] : memref<8x256xf32, #tpu.memory_space<vmem>>, vector<1x256xf32>
    %18 = arith.mulf %16, %17 : vector<1x256xf32>
    %c0_20 = arith.constant 0 : index
    %c17_21 = arith.constant 17 : index
    %19 = vector.load %arg8[%c0_20, %c17_21] : memref<16x290xf32, #tpu.memory_space<vmem>>, vector<1x256xf32>
    %c0_22 = arith.constant 0 : index
    %c18 = arith.constant 18 : index
    %20 = vector.load %arg8[%c0_22, %c18] : memref<16x290xf32, #tpu.memory_space<vmem>>, vector<1x256xf32>
    %c4 = arith.constant 4 : index
    %c0_23 = arith.constant 0 : index
    %21 = vector.load %arg2[%c4, %c0_23] : memref<8x256xf32, #tpu.memory_space<vmem>>, vector<1x256xf32>
    %22 = arith.mulf %20, %21 : vector<1x256xf32>
    %c0_24 = arith.constant 0 : index
    %c32 = arith.constant 32 : index
    %23 = vector.load %arg8[%c0_24, %c32] : memref<16x290xf32, #tpu.memory_space<vmem>>, vector<1x256xf32>
    %c5 = arith.constant 5 : index
    %c0_25 = arith.constant 0 : index
    %24 = vector.load %arg2[%c5, %c0_25] : memref<8x256xf32, #tpu.memory_space<vmem>>, vector<1x256xf32>
    %25 = arith.mulf %23, %24 : vector<1x256xf32>
    %c0_26 = arith.constant 0 : index
    %c33 = arith.constant 33 : index
    %26 = vector.load %arg8[%c0_26, %c33] : memref<16x290xf32, #tpu.memory_space<vmem>>, vector<1x256xf32>
    %c6 = arith.constant 6 : index
    %c0_27 = arith.constant 0 : index
    %27 = vector.load %arg2[%c6, %c0_27] : memref<8x256xf32, #tpu.memory_space<vmem>>, vector<1x256xf32>
    %28 = arith.mulf %26, %27 : vector<1x256xf32>
    %c0_28 = arith.constant 0 : index
    %c34 = arith.constant 34 : index
    %29 = vector.load %arg8[%c0_28, %c34] : memref<16x290xf32, #tpu.memory_space<vmem>>, vector<1x256xf32>
    %c7 = arith.constant 7 : index
    %c0_29 = arith.constant 0 : index
    %30 = vector.load %arg2[%c7, %c0_29] : memref<8x256xf32, #tpu.memory_space<vmem>>, vector<1x256xf32>
    %31 = arith.mulf %29, %30 : vector<1x256xf32>
    %32 = tpu.concatenate %9, %12, %15, %18, %19, %22, %25, %28, %31, %3 in 0 : vector<1x256xf32>, vector<1x256xf32>, vector<1x256xf32>, vector<1x256xf32>, vector<1x256xf32>, vector<1x256xf32>, vector<1x256xf32>, vector<1x256xf32>, vector<1x256xf32>, vector<1x256xf32> -> vector<10x256xf32>
    %cst_30 = arith.constant dense<0.000000e+00> : vector<8x256xf32>
    %33 = tpu.matmul %6, %32, %cst_30 {dimension_numbers = #tpu.dot_dimension_numbers<[1], [0], [0], [1], [0, 0, 1, 1], [], []>} : vector<8x10xf32>, vector<10x256xf32>, vector<8x256xf32> -> vector<8x256xf32>
    %c0_31 = arith.constant 0 : index
    %c17_32 = arith.constant 17 : index
    %34 = vector.load %arg8[%c0_31, %c17_32] : memref<16x290xf32, #tpu.memory_space<vmem>>, vector<8x256xf32>
    tpu.vector_store %arg8[%c0_31, %c17_32], %33 {strides = array<i32>} : memref<16x290xf32, #tpu.memory_space<vmem>>, vector<8x256xf32>,
    %c0_33 = arith.constant 0 : index
    %c0_34 = arith.constant 0 : index
    %35 = vector.load %arg4[%c0_33, %c0_34] : memref<8x73xf32, #tpu.memory_space<vmem>>, vector<8x73xf32>
    %c0_35 = arith.constant 0 : index
    %c0_36 = arith.constant 0 : index
    %36 = vector.load %arg8[%c0_35, %c0_36] : memref<16x290xf32, #tpu.memory_space<vmem>>, vector<8x256xf32>
    %c0_37 = arith.constant 0 : index
    %c0_38 = arith.constant 0 : index
    %37 = vector.load %arg2[%c0_37, %c0_38] : memref<8x256xf32, #tpu.memory_space<vmem>>, vector<1x256xf32>
    %38 = vector.broadcast %37 : vector<1x256xf32> to vector<8x256xf32>
    %39 = arith.mulf %36, %38 : vector<8x256xf32>
    %c0_39 = arith.constant 0 : index
    %c1_40 = arith.constant 1 : index
    %40 = vector.load %arg8[%c0_39, %c1_40] : memref<16x290xf32, #tpu.memory_space<vmem>>, vector<8x256xf32>
    %c1_41 = arith.constant 1 : index
    %c0_42 = arith.constant 0 : index
    %41 = vector.load %arg2[%c1_41, %c0_42] : memref<8x256xf32, #tpu.memory_space<vmem>>, vector<1x256xf32>
    %42 = vector.broadcast %41 : vector<1x256xf32> to vector<8x256xf32>
    %43 = arith.mulf %40, %42 : vector<8x256xf32>
    %c0_43 = arith.constant 0 : index
    %c2_44 = arith.constant 2 : index
    %44 = vector.load %arg8[%c0_43, %c2_44] : memref<16x290xf32, #tpu.memory_space<vmem>>, vector<8x256xf32>
    %c2_45 = arith.constant 2 : index
    %c0_46 = arith.constant 0 : index
    %45 = vector.load %arg2[%c2_45, %c0_46] : memref<8x256xf32, #tpu.memory_space<vmem>>, vector<1x256xf32>
    %46 = vector.broadcast %45 : vector<1x256xf32> to vector<8x256xf32>
    %47 = arith.mulf %44, %46 : vector<8x256xf32>
    %c0_47 = arith.constant 0 : index
    %c16_48 = arith.constant 16 : index
    %48 = vector.load %arg8[%c0_47, %c16_48] : memref<16x290xf32, #tpu.memory_space<vmem>>, vector<8x256xf32>
    %c3_49 = arith.constant 3 : index
    %c0_50 = arith.constant 0 : index
    %49 = vector.load %arg2[%c3_49, %c0_50] : memref<8x256xf32, #tpu.memory_space<vmem>>, vector<1x256xf32>
    %50 = vector.broadcast %49 : vector<1x256xf32> to vector<8x256xf32>
    %51 = arith.mulf %48, %50 : vector<8x256xf32>
    %c0_51 = arith.constant 0 : index
    %c17_52 = arith.constant 17 : index
    %52 = vector.load %arg8[%c0_51, %c17_52] : memref<16x290xf32, #tpu.memory_space<vmem>>, vector<8x256xf32>
    %c0_53 = arith.constant 0 : index
    %c18_54 = arith.constant 18 : index
    %53 = vector.load %arg8[%c0_53, %c18_54] : memref<16x290xf32, #tpu.memory_space<vmem>>, vector<8x256xf32>
    %c4_55 = arith.constant 4 : index
    %c0_56 = arith.constant 0 : index
    %54 = vector.load %arg2[%c4_55, %c0_56] : memref<8x256xf32, #tpu.memory_space<vmem>>, vector<1x256xf32>
    %55 = vector.broadcast %54 : vector<1x256xf32> to vector<8x256xf32>
    %56 = arith.mulf %53, %55 : vector<8x256xf32>
    %c0_57 = arith.constant 0 : index
    %c32_58 = arith.constant 32 : index
    %57 = vector.load %arg8[%c0_57, %c32_58] : memref<16x290xf32, #tpu.memory_space<vmem>>, vector<8x256xf32>
    %c5_59 = arith.constant 5 : index
    %c0_60 = arith.constant 0 : index
    %58 = vector.load %arg2[%c5_59, %c0_60] : memref<8x256xf32, #tpu.memory_space<vmem>>, vector<1x256xf32>
    %59 = vector.broadcast %58 : vector<1x256xf32> to vector<8x256xf32>
    %60 = arith.mulf %57, %59 : vector<8x256xf32>
    %c0_61 = arith.constant 0 : index
    %c33_62 = arith.constant 33 : index
    %61 = vector.load %arg8[%c0_61, %c33_62] : memref<16x290xf32, #tpu.memory_space<vmem>>, vector<8x256xf32>
    %c6_63 = arith.constant 6 : index
    %c0_64 = arith.constant 0 : index
    %62 = vector.load %arg2[%c6_63, %c0_64] : memref<8x256xf32, #tpu.memory_space<vmem>>, vector<1x256xf32>
    %63 = vector.broadcast %62 : vector<1x256xf32> to vector<8x256xf32>
    %64 = arith.mulf %61, %63 : vector<8x256xf32>
    %c0_65 = arith.constant 0 : index
    %c34_66 = arith.constant 34 : index
    %65 = vector.load %arg8[%c0_65, %c34_66] : memref<16x290xf32, #tpu.memory_space<vmem>>, vector<8x256xf32>
    %c7_67 = arith.constant 7 : index
    %c0_68 = arith.constant 0 : index
    %66 = vector.load %arg2[%c7_67, %c0_68] : memref<8x256xf32, #tpu.memory_space<vmem>>, vector<1x256xf32>
    %67 = vector.broadcast %66 : vector<1x256xf32> to vector<8x256xf32>
    %68 = arith.mulf %65, %67 : vector<8x256xf32>
    %69 = tpu.concatenate %39, %43, %47, %51, %52, %56, %60, %64, %68, %3 in 0 : vector<8x256xf32>, vector<8x256xf32>, vector<8x256xf32>, vector<8x256xf32>, vector<8x256xf32>, vector<8x256xf32>, vector<8x256xf32>, vector<8x256xf32>, vector<8x256xf32>, vector<1x256xf32> -> vector<73x256xf32>
    %cst_69 = arith.constant dense<0.000000e+00> : vector<8x256xf32>
    %70 = tpu.matmul %35, %69, %cst_69 {dimension_numbers = #tpu.dot_dimension_numbers<[1], [0], [0], [1], [0, 0, 1, 1], [], []>} : vector<8x73xf32>, vector<73x256xf32>, vector<8x256xf32> -> vector<8x256xf32>
    %c0_70 = arith.constant 0 : index
    %c17_71 = arith.constant 17 : index
    %71 = vector.load %arg8[%c0_70, %c17_71] : memref<16x290xf32, #tpu.memory_space<vmem>>, vector<8x256xf32>
    tpu.vector_store %arg8[%c0_70, %c17_71], %70 {strides = array<i32>} : memref<16x290xf32, #tpu.memory_space<vmem>>, vector<8x256xf32>,
    %c0_72 = arith.constant 0 : index
    %c0_73 = arith.constant 0 : index
    %72 = vector.load %arg5[%c0_72, %c0_73] : memref<16x73xf32, #tpu.memory_space<vmem>>, vector<16x73xf32>
    %c0_74 = arith.constant 0 : index
    %c0_75 = arith.constant 0 : index
    %73 = vector.load %arg8[%c0_74, %c0_75] : memref<16x290xf32, #tpu.memory_space<vmem>>, vector<8x256xf32>
    %c0_76 = arith.constant 0 : index
    %c0_77 = arith.constant 0 : index
    %74 = vector.load %arg2[%c0_76, %c0_77] : memref<8x256xf32, #tpu.memory_space<vmem>>, vector<1x256xf32>
    %75 = vector.broadcast %74 : vector<1x256xf32> to vector<8x256xf32>
    %76 = arith.mulf %73, %75 : vector<8x256xf32>
    %c0_78 = arith.constant 0 : index
    %c1_79 = arith.constant 1 : index
    %77 = vector.load %arg8[%c0_78, %c1_79] : memref<16x290xf32, #tpu.memory_space<vmem>>, vector<8x256xf32>
    %c1_80 = arith.constant 1 : index
    %c0_81 = arith.constant 0 : index
    %78 = vector.load %arg2[%c1_80, %c0_81] : memref<8x256xf32, #tpu.memory_space<vmem>>, vector<1x256xf32>
    %79 = vector.broadcast %78 : vector<1x256xf32> to vector<8x256xf32>
    %80 = arith.mulf %77, %79 : vector<8x256xf32>
    %c0_82 = arith.constant 0 : index
    %c2_83 = arith.constant 2 : index
    %81 = vector.load %arg8[%c0_82, %c2_83] : memref<16x290xf32, #tpu.memory_space<vmem>>, vector<8x256xf32>
    %c2_84 = arith.constant 2 : index
    %c0_85 = arith.constant 0 : index
    %82 = vector.load %arg2[%c2_84, %c0_85] : memref<8x256xf32, #tpu.memory_space<vmem>>, vector<1x256xf32>
    %83 = vector.broadcast %82 : vector<1x256xf32> to vector<8x256xf32>
    %84 = arith.mulf %81, %83 : vector<8x256xf32>
    %c0_86 = arith.constant 0 : index
    %c16_87 = arith.constant 16 : index
    %85 = vector.load %arg8[%c0_86, %c16_87] : memref<16x290xf32, #tpu.memory_space<vmem>>, vector<8x256xf32>
    %c3_88 = arith.constant 3 : index
    %c0_89 = arith.constant 0 : index
    %86 = vector.load %arg2[%c3_88, %c0_89] : memref<8x256xf32, #tpu.memory_space<vmem>>, vector<1x256xf32>
    %87 = vector.broadcast %86 : vector<1x256xf32> to vector<8x256xf32>
    %88 = arith.mulf %85, %87 : vector<8x256xf32>
    %c0_90 = arith.constant 0 : index
    %c17_91 = arith.constant 17 : index
    %89 = vector.load %arg8[%c0_90, %c17_91] : memref<16x290xf32, #tpu.memory_space<vmem>>, vector<8x256xf32>
    %c0_92 = arith.constant 0 : index
    %c18_93 = arith.constant 18 : index
    %90 = vector.load %arg8[%c0_92, %c18_93] : memref<16x290xf32, #tpu.memory_space<vmem>>, vector<8x256xf32>
    %c4_94 = arith.constant 4 : index
    %c0_95 = arith.constant 0 : index
    %91 = vector.load %arg2[%c4_94, %c0_95] : memref<8x256xf32, #tpu.memory_space<vmem>>, vector<1x256xf32>
    %92 = vector.broadcast %91 : vector<1x256xf32> to vector<8x256xf32>
    %93 = arith.mulf %90, %92 : vector<8x256xf32>
    %c0_96 = arith.constant 0 : index
    %c32_97 = arith.constant 32 : index
    %94 = vector.load %arg8[%c0_96, %c32_97] : memref<16x290xf32, #tpu.memory_space<vmem>>, vector<8x256xf32>
    %c5_98 = arith.constant 5 : index
    %c0_99 = arith.constant 0 : index
    %95 = vector.load %arg2[%c5_98, %c0_99] : memref<8x256xf32, #tpu.memory_space<vmem>>, vector<1x256xf32>
    %96 = vector.broadcast %95 : vector<1x256xf32> to vector<8x256xf32>
    %97 = arith.mulf %94, %96 : vector<8x256xf32>
    %c0_100 = arith.constant 0 : index
    %c33_101 = arith.constant 33 : index
    %98 = vector.load %arg8[%c0_100, %c33_101] : memref<16x290xf32, #tpu.memory_space<vmem>>, vector<8x256xf32>
    %c6_102 = arith.constant 6 : index
    %c0_103 = arith.constant 0 : index
    %99 = vector.load %arg2[%c6_102, %c0_103] : memref<8x256xf32, #tpu.memory_space<vmem>>, vector<1x256xf32>
    %100 = vector.broadcast %99 : vector<1x256xf32> to vector<8x256xf32>
    %101 = arith.mulf %98, %100 : vector<8x256xf32>
    %c0_104 = arith.constant 0 : index
    %c34_105 = arith.constant 34 : index
    %102 = vector.load %arg8[%c0_104, %c34_105] : memref<16x290xf32, #tpu.memory_space<vmem>>, vector<8x256xf32>
    %c7_106 = arith.constant 7 : index
    %c0_107 = arith.constant 0 : index
    %103 = vector.load %arg2[%c7_106, %c0_107] : memref<8x256xf32, #tpu.memory_space<vmem>>, vector<1x256xf32>
    %104 = vector.broadcast %103 : vector<1x256xf32> to vector<8x256xf32>
    %105 = arith.mulf %102, %104 : vector<8x256xf32>
    %106 = tpu.concatenate %76, %80, %84, %88, %89, %93, %97, %101, %105, %3 in 0 : vector<8x256xf32>, vector<8x256xf32>, vector<8x256xf32>, vector<8x256xf32>, vector<8x256xf32>, vector<8x256xf32>, vector<8x256xf32>, vector<8x256xf32>, vector<8x256xf32>, vector<1x256xf32> -> vector<73x256xf32>
    %cst_108 = arith.constant dense<0.000000e+00> : vector<16x256xf32>
    %107 = tpu.matmul %72, %106, %cst_108 {dimension_numbers = #tpu.dot_dimension_numbers<[1], [0], [0], [1], [0, 0, 1, 1], [], []>} : vector<16x73xf32>, vector<73x256xf32>, vector<16x256xf32> -> vector<16x256xf32>
    %c0_109 = arith.constant 0 : index
    %c17_110 = arith.constant 17 : index
    %108 = vector.load %arg8[%c0_109, %c17_110] : memref<16x290xf32, #tpu.memory_space<vmem>>, vector<16x256xf32>
    tpu.vector_store %arg8[%c0_109, %c17_110], %107 {strides = array<i32>} : memref<16x290xf32, #tpu.memory_space<vmem>>, vector<16x256xf32>,
    %c0_111 = arith.constant 0 : index
    %c0_112 = arith.constant 0 : index
    %109 = vector.load %arg6[%c0_111, %c0_112] : memref<1x145xf32, #tpu.memory_space<vmem>>, vector<1x145xf32>
    %c0_113 = arith.constant 0 : index
    %c0_114 = arith.constant 0 : index
    %110 = vector.load %arg8[%c0_113, %c0_114] : memref<16x290xf32, #tpu.memory_space<vmem>>, vector<16x256xf32>
    %c0_115 = arith.constant 0 : index
    %c0_116 = arith.constant 0 : index
    %111 = vector.load %arg2[%c0_115, %c0_116] : memref<8x256xf32, #tpu.memory_space<vmem>>, vector<1x256xf32>
    %112 = vector.broadcast %111 : vector<1x256xf32> to vector<16x256xf32>
    %113 = arith.mulf %110, %112 : vector<16x256xf32>
    %c0_117 = arith.constant 0 : index
    %c1_118 = arith.constant 1 : index
    %114 = vector.load %arg8[%c0_117, %c1_118] : memref<16x290xf32, #tpu.memory_space<vmem>>, vector<16x256xf32>
    %c1_119 = arith.constant 1 : index
    %c0_120 = arith.constant 0 : index
    %115 = vector.load %arg2[%c1_119, %c0_120] : memref<8x256xf32, #tpu.memory_space<vmem>>, vector<1x256xf32>
    %116 = vector.broadcast %115 : vector<1x256xf32> to vector<16x256xf32>
    %117 = arith.mulf %114, %116 : vector<16x256xf32>
    %c0_121 = arith.constant 0 : index
    %c2_122 = arith.constant 2 : index
    %118 = vector.load %arg8[%c0_121, %c2_122] : memref<16x290xf32, #tpu.memory_space<vmem>>, vector<16x256xf32>
    %c2_123 = arith.constant 2 : index
    %c0_124 = arith.constant 0 : index
    %119 = vector.load %arg2[%c2_123, %c0_124] : memref<8x256xf32, #tpu.memory_space<vmem>>, vector<1x256xf32>
    %120 = vector.broadcast %119 : vector<1x256xf32> to vector<16x256xf32>
    %121 = arith.mulf %118, %120 : vector<16x256xf32>
    %c0_125 = arith.constant 0 : index
    %c16_126 = arith.constant 16 : index
    %122 = vector.load %arg8[%c0_125, %c16_126] : memref<16x290xf32, #tpu.memory_space<vmem>>, vector<16x256xf32>
    %c3_127 = arith.constant 3 : index
    %c0_128 = arith.constant 0 : index
    %123 = vector.load %arg2[%c3_127, %c0_128] : memref<8x256xf32, #tpu.memory_space<vmem>>, vector<1x256xf32>
    %124 = vector.broadcast %123 : vector<1x256xf32> to vector<16x256xf32>
    %125 = arith.mulf %122, %124 : vector<16x256xf32>
    %c0_129 = arith.constant 0 : index
    %c17_130 = arith.constant 17 : index
    %126 = vector.load %arg8[%c0_129, %c17_130] : memref<16x290xf32, #tpu.memory_space<vmem>>, vector<16x256xf32>
    %c0_131 = arith.constant 0 : index
    %c18_132 = arith.constant 18 : index
    %127 = vector.load %arg8[%c0_131, %c18_132] : memref<16x290xf32, #tpu.memory_space<vmem>>, vector<16x256xf32>
    %c4_133 = arith.constant 4 : index
    %c0_134 = arith.constant 0 : index
    %128 = vector.load %arg2[%c4_133, %c0_134] : memref<8x256xf32, #tpu.memory_space<vmem>>, vector<1x256xf32>
    %129 = vector.broadcast %128 : vector<1x256xf32> to vector<16x256xf32>
    %130 = arith.mulf %127, %129 : vector<16x256xf32>
    %c0_135 = arith.constant 0 : index
    %c32_136 = arith.constant 32 : index
    %131 = vector.load %arg8[%c0_135, %c32_136] : memref<16x290xf32, #tpu.memory_space<vmem>>, vector<16x256xf32>
    %c5_137 = arith.constant 5 : index
    %c0_138 = arith.constant 0 : index
    %132 = vector.load %arg2[%c5_137, %c0_138] : memref<8x256xf32, #tpu.memory_space<vmem>>, vector<1x256xf32>
    %133 = vector.broadcast %132 : vector<1x256xf32> to vector<16x256xf32>
    %134 = arith.mulf %131, %133 : vector<16x256xf32>
    %c0_139 = arith.constant 0 : index
    %c33_140 = arith.constant 33 : index
    %135 = vector.load %arg8[%c0_139, %c33_140] : memref<16x290xf32, #tpu.memory_space<vmem>>, vector<16x256xf32>
    %c6_141 = arith.constant 6 : index
    %c0_142 = arith.constant 0 : index
    %136 = vector.load %arg2[%c6_141, %c0_142] : memref<8x256xf32, #tpu.memory_space<vmem>>, vector<1x256xf32>
    %137 = vector.broadcast %136 : vector<1x256xf32> to vector<16x256xf32>
    %138 = arith.mulf %135, %137 : vector<16x256xf32>
    %c0_143 = arith.constant 0 : index
    %c34_144 = arith.constant 34 : index
    %139 = vector.load %arg8[%c0_143, %c34_144] : memref<16x290xf32, #tpu.memory_space<vmem>>, vector<16x256xf32>
    %c7_145 = arith.constant 7 : index
    %c0_146 = arith.constant 0 : index
    %140 = vector.load %arg2[%c7_145, %c0_146] : memref<8x256xf32, #tpu.memory_space<vmem>>, vector<1x256xf32>
    %141 = vector.broadcast %140 : vector<1x256xf32> to vector<16x256xf32>
    %142 = arith.mulf %139, %141 : vector<16x256xf32>
    %143 = tpu.concatenate %113, %117, %121, %125, %126, %130, %134, %138, %142, %3 in 0 : vector<16x256xf32>, vector<16x256xf32>, vector<16x256xf32>, vector<16x256xf32>, vector<16x256xf32>, vector<16x256xf32>, vector<16x256xf32>, vector<16x256xf32>, vector<16x256xf32>, vector<1x256xf32> -> vector<145x256xf32>
    %cst_147 = arith.constant dense<0.000000e+00> : vector<1x256xf32>
    %144 = tpu.matmul %109, %143, %cst_147 {dimension_numbers = #tpu.dot_dimension_numbers<[1], [0], [0], [1], [0, 0, 1, 1], [], []>} : vector<1x145xf32>, vector<145x256xf32>, vector<1x256xf32> -> vector<1x256xf32>
    %c0_148 = arith.constant 0 : index
    %c0_149 = arith.constant 0 : index
    %145 = vector.load %arg7[%c0_148, %c0_149] : memref<1x256xf32, #tpu.memory_space<vmem>>, vector<1x256xf32>
    tpu.vector_store %arg7[%c0_148, %c0_149], %144 {strides = array<i32>} : memref<1x256xf32, #tpu.memory_space<vmem>>, vector<1x256xf32>,
    return
  }
  func.func @transform_0(%arg0: i32) -> (i32, i32) {
    %c0_i32 = arith.constant 0 : i32
    %c0_i32_0 = arith.constant 0 : i32
    return %c0_i32, %arg0 : i32, i32
  }
  func.func @transform_1(%arg0: i32) -> (i32, i32) {
    %c0_i32 = arith.constant 0 : i32
    %c0_i32_0 = arith.constant 0 : i32
    %c0_i32_1 = arith.constant 0 : i32
    return %c0_i32, %c0_i32_0 : i32, i32
  }
  func.func @transform_2(%arg0: i32) -> (i32, i32) {
    %c0_i32 = arith.constant 0 : i32
    %c0_i32_0 = arith.constant 0 : i32
    %c0_i32_1 = arith.constant 0 : i32
    return %c0_i32, %c0_i32_0 : i32, i32
  }
  func.func @transform_3(%arg0: i32) -> (i32, i32) {
    %c0_i32 = arith.constant 0 : i32
    %c0_i32_0 = arith.constant 0 : i32
    %c0_i32_1 = arith.constant 0 : i32
    return %c0_i32, %c0_i32_0 : i32, i32
  }
  func.func @transform_4(%arg0: i32) -> (i32, i32) {
    %c0_i32 = arith.constant 0 : i32
    %c0_i32_0 = arith.constant 0 : i32
    %c0_i32_1 = arith.constant 0 : i32
    return %c0_i32, %c0_i32_0 : i32, i32
  }
  func.func @transform_5(%arg0: i32) -> (i32, i32) {
    %c0_i32 = arith.constant 0 : i32
    %c0_i32_0 = arith.constant 0 : i32
    %c0_i32_1 = arith.constant 0 : i32
    return %c0_i32, %c0_i32_0 : i32, i32
  }
  func.func @transform_6(%arg0: i32) -> (i32, i32) {
    %c0_i32 = arith.constant 0 : i32
    %c0_i32_0 = arith.constant 0 : i32
    return %c0_i32, %arg0 : i32, i32
  }
}

</mosaic_0001>

<llo_original>
// kernel: tpu_custom_call.1
$region0: #{tpu_custom_call.1}
  #allocation0 [shape = 'u32[]', space=smem, size = 0x4, offset = 0x4, fixed_abs, tag = 'smem constant byte address 0x4 - core index']
  #allocation1 [shape = 'u32[144,128]{1,0:T(1,128)}', space=vmem, size = 0x12000, scoped, tag = 'internal scratch']
  #allocation2 [shape = 'f32[16,290]{1,0:T(8,128)}', space=vmem, size = 0x6000, scoped, tag = 'scratch operand']
  %s0 = inlined_call_operand.hbm [shape: f32[1,512], index: 0, kind: input, shape index: {}]
  %s1 = inlined_call_operand.hbm [shape: f32[8,256], index: 1, kind: input, shape index: {}]
  %s2 = inlined_call_operand.hbm [shape: f32[8,10], index: 2, kind: input, shape index: {}]
  %s3 = inlined_call_operand.vmem [shape: f32[8,73], index: 3, kind: input, shape index: {}]
  %s4 = inlined_call_operand.hbm [shape: f32[16,73], index: 4, kind: input, shape index: {}]
  %s5 = inlined_call_operand.vmem [shape: f32[1,145], index: 5, kind: input, shape index: {}]
  %s6 = inlined_call_operand.hbm [shape: f32[1,512], index: 6, kind: output, shape index: {}]
  %s7 = sld [smem:[#allocation0]]
  $region73: #{tpu_custom_call.1} parent=0
    _
  %s9 = ssub.s32 1, %s7
  %s10 = scalar_select 0, %s9, %s7
  $region1: #{tpu_custom_call.1} parent=0
    #allocation3 [shape = 'u8[2048]{0}', space=vmem, size = 0x800, scoped, tag = 'input window, operand 0']
    #allocation4 [shape = 's32[2]{0}', space=sflag, size = 0x8, scoped, tag = 'scoped memory for tpu_custom_call.1']
    #allocation5 [shape = 's32[2]{0}', space=sflag, size = 0x8, scoped, tag = 'scoped memory for tpu_custom_call.1']
    #allocation6 [shape = 'u8[8192]{0}', space=vmem, size = 0x2000, scoped, tag = 'input window, operand 1, single buffered']
    #allocation7 [shape = 's32[1]{0}', space=sflag, size = 0x4, scoped, tag = 'scoped memory for tpu_custom_call.1']
    #allocation8 [shape = 'u8[4096]{0}', space=vmem, size = 0x1000, scoped, tag = 'input window, operand 2, single buffered']
    #allocation9 [shape = 'u8[8192]{0}', space=vmem, size = 0x2000, scoped, tag = 'input window, operand 4, single buffered']
    #allocation10 [shape = 's32[1]{0}', space=sflag, size = 0x4, scoped, tag = 'scoped memory for tpu_custom_call.1']
    #allocation11 [shape = 'u8[2048]{0}', space=vmem, size = 0x800, scoped, tag = 'output window, operand 0']
    %11 = vsyncpa [#allocation4], 0
    %s12 = scalar_lea.sflag [#allocation4], 1
    %13 = vsyncpa %s12, 0
    %14 = vsyncpa [#allocation7], 0
    %15 = vsyncpa [#allocation10], 0
    %16 = vsyncpa [#allocation5], 0
    %s17 = scalar_lea.sflag [#allocation5], 1
    %18 = vsyncpa %s17, 0
    loop: start=0, step=1, limit=4
    $region2: #{tpu_custom_call.1} parent=1 // loop_pre_header
      _
    $region3: #{tpu_custom_call.1} parent=1 // loop_header
      %s20 = sphi 0, %s24
      %p21 = scmp.ge.s32.totalorder %s20, 4
      %s30 = sphi 0, %s32
      %s33 = sphi 0, %s30
      %s34 = sphi 0, %s33
      %s50 = sphi 0, %s34
      %s54 = sphi 0, %s54
      %s56 = sphi 0, %s54
      %s57 = sphi 0, %s56
      %s71 = sphi 0, %s57
      %s75 = sphi 0, %s75
      %s77 = sphi 0, %s75
      %s78 = sphi 0, %s77
      %s92 = sphi 0, %s78
      %s96 = sphi 0, %s96
      %s98 = sphi 0, %s96
      %s99 = sphi 0, %s98
      %s113 = sphi 0, %s99
      %s117 = sphi 0, %s117
      %s119 = sphi 0, %s117
      %s120 = sphi 0, %s119
      %s134 = sphi 0, %s120
      %s138 = sphi 0, %s138
      %s140 = sphi 0, %s138
      %s141 = sphi 0, %s140
      %s155 = sphi 0, %s141
      %s161 = sphi 0, %s163
      %s164 = sphi 0, %s161
      %s165 = sphi 0, %s164
      %s181 = sphi 0, %s165
    $region4: #{tpu_custom_call.1} parent=1 // loop_header_branch
      %23 = sbr.rel (%p21) target = $region8
    $region5: #{tpu_custom_call.1} parent=1 // loop_body
      %s25 = ssub.s32 %s20, 1
      %s26 = ssub.s32 %s20, 2
      %s27 = sadd.s32 %s20, 1
      %s28 = ssub.s32 %s20, %s27
      %p29 = scmp.eq.s32.totalorder %s28, 0
      %s31 = sadd.s32 %s30, 1
      %s32 = scalar_select %p29, %s30, %s31
      %p35 = pneg %p29
      %p36 = scmp.eq.s32.totalorder %s20, 1
      %p37 = por %p35, %p36
      %p38 = scmp.ne.s32.totalorder %s30, %s33
      %p39 = scmp.eq.s32.totalorder %s20, 0
      %p40 = por %p38, %p39
      %p41 = scmp.ne.s32.totalorder %s30, %s33
      %p42 = scmp.eq.s32.totalorder %s25, 1
      %p43 = por %p41, %p42
      %p44 = scmp.ne.s32.totalorder %s33, %s34
      %p45 = scmp.eq.s32.totalorder %s25, 0
      %p46 = por %p44, %p45
      %p47 = scmp.ne.s32.totalorder %s33, %s34
      %p48 = scmp.eq.s32.totalorder %s26, 1
      %p49 = por %p47, %p48
      %p51 = scmp.ne.s32.totalorder %s34, %s50
      %p52 = scmp.eq.s32.totalorder %s26, 0
      %p53 = por %p51, %p52
      %s55 = sadd.s32 %s54, 1
      %p58 = scmp.eq.s32.totalorder %s20, 1
      %p59 = scmp.ne.s32.totalorder %s54, %s56
      %p60 = scmp.eq.s32.totalorder %s20, 0
      %p61 = por %p59, %p60
      %p62 = scmp.ne.s32.totalorder %s54, %s56
      %p63 = scmp.eq.s32.totalorder %s25, 1
      %p64 = por %p62, %p63
      %p65 = scmp.ne.s32.totalorder %s56, %s57
      %p66 = scmp.eq.s32.totalorder %s25, 0
      %p67 = por %p65, %p66
      %p68 = scmp.ne.s32.totalorder %s56, %s57
      %p69 = scmp.eq.s32.totalorder %s26, 1
      %p70 = por %p68, %p69
      %p72 = scmp.ne.s32.totalorder %s57, %s71
      %p73 = scmp.eq.s32.totalorder %s26, 0
      %p74 = por %p72, %p73
      %s76 = sadd.s32 %s75, 1
      %p79 = scmp.eq.s32.totalorder %s20, 1
      %p80 = scmp.ne.s32.totalorder %s75, %s77
      %p81 = scmp.eq.s32.totalorder %s20, 0
      %p82 = por %p80, %p81
      %p83 = scmp.ne.s32.totalorder %s75, %s77
      %p84 = scmp.eq.s32.totalorder %s25, 1
      %p85 = por %p83, %p84
      %p86 = scmp.ne.s32.totalorder %s77, %s78
      %p87 = scmp.eq.s32.totalorder %s25, 0
      %p88 = por %p86, %p87
      %p89 = scmp.ne.s32.totalorder %s77, %s78
      %p90 = scmp.eq.s32.totalorder %s26, 1
      %p91 = por %p89, %p90
      %p93 = scmp.ne.s32.totalorder %s78, %s92
      %p94 = scmp.eq.s32.totalorder %s26, 0
      %p95 = por %p93, %p94
      %s97 = sadd.s32 %s96, 1
      %p100 = scmp.eq.s32.totalorder %s20, 1
      %p101 = scmp.ne.s32.totalorder %s96, %s98
      %p102 = scmp.eq.s32.totalorder %s20, 0
      %p103 = por %p101, %p102
      %p104 = scmp.ne.s32.totalorder %s96, %s98
      %p105 = scmp.eq.s32.totalorder %s25, 1
      %p106 = por %p104, %p105
      %p107 = scmp.ne.s32.totalorder %s98, %s99
      %p108 = scmp.eq.s32.totalorder %s25, 0
      %p109 = por %p107, %p108
      %p110 = scmp.ne.s32.totalorder %s98, %s99
      %p111 = scmp.eq.s32.totalorder %s26, 1
      %p112 = por %p110, %p111
      %p114 = scmp.ne.s32.totalorder %s99, %s113
      %p115 = scmp.eq.s32.totalorder %s26, 0
      %p116 = por %p114, %p115
      %s118 = sadd.s32 %s117, 1
      %p121 = scmp.eq.s32.totalorder %s20, 1
      %p122 = scmp.ne.s32.totalorder %s117, %s119
      %p123 = scmp.eq.s32.totalorder %s20, 0
      %p124 = por %p122, %p123
      %p125 = scmp.ne.s32.totalorder %s117, %s119
      %p126 = scmp.eq.s32.totalorder %s25, 1
      %p127 = por %p125, %p126
      %p128 = scmp.ne.s32.totalorder %s119, %s120
      %p129 = scmp.eq.s32.totalorder %s25, 0
      %p130 = por %p128, %p129
      %p131 = scmp.ne.s32.totalorder %s119, %s120
      %p132 = scmp.eq.s32.totalorder %s26, 1
      %p133 = por %p131, %p132
      %p135 = scmp.ne.s32.totalorder %s120, %s134
      %p136 = scmp.eq.s32.totalorder %s26, 0
      %p137 = por %p135, %p136
      %s139 = sadd.s32 %s138, 1
      %p142 = scmp.eq.s32.totalorder %s20, 1
      %p143 = scmp.ne.s32.totalorder %s138, %s140
      %p144 = scmp.eq.s32.totalorder %s20, 0
      %p145 = por %p143, %p144
      %p146 = scmp.ne.s32.totalorder %s138, %s140
      %p147 = scmp.eq.s32.totalorder %s25, 1
      %p148 = por %p146, %p147
      %p149 = scmp.ne.s32.totalorder %s140, %s141
      %p150 = scmp.eq.s32.totalorder %s25, 0
      %p151 = por %p149, %p150
      %p152 = scmp.ne.s32.totalorder %s140, %s141
      %p153 = scmp.eq.s32.totalorder %s26, 1
      %p154 = por %p152, %p153
      %p156 = scmp.ne.s32.totalorder %s141, %s155
      %p157 = scmp.eq.s32.totalorder %s26, 0
      %p158 = por %p156, %p157
      %s159 = ssub.s32 %s20, %s27
      %p160 = scmp.eq.s32.totalorder %s159, 0
      %s162 = sadd.s32 %s161, 1
      %s163 = scalar_select %p160, %s161, %s162
      %p166 = pneg %p160
      %p167 = scmp.eq.s32.totalorder %s20, 1
      %p168 = por %p166, %p167
      %p169 = scmp.ne.s32.totalorder %s161, %s164
      %p170 = scmp.eq.s32.totalorder %s20, 0
      %p171 = por %p169, %p170
      %p172 = scmp.ne.s32.totalorder %s161, %s164
      %p173 = scmp.eq.s32.totalorder %s25, 1
      %p174 = por %p172, %p173
      %p175 = scmp.ne.s32.totalorder %s164, %s165
      %p176 = scmp.eq.s32.totalorder %s25, 0
      %p177 = por %p175, %p176
      %p178 = scmp.ne.s32.totalorder %s164, %s165
      %p179 = scmp.eq.s32.totalorder %s26, 1
      %p180 = por %p178, %p179
      %p182 = scmp.ne.s32.totalorder %s165, %s181
      %p183 = scmp.eq.s32.totalorder %s26, 0
      %p184 = por %p182, %p183
      %p185 = scmp.le.s32.totalorder 1, %s20
      %p186 = scmp.lt.s32.totalorder %s20, 3
      %p187 = pnand %p185, %p186
      %p188 = pneg %p187
      // Predicated region
      $region9: #{tpu_custom_call.1} parent=5 // pred_check
        _
      $region10: #{tpu_custom_call.1} parent=5 // pred_check_branch
        %190 = sbr.rel (%p187) target = $region12
      $region11: #{tpu_custom_call.1} parent=5 // pred_region
        %s191 = ssub.s32 %s20, 1
        // Predicated region
        $region13: #{tpu_custom_call.1} parent=11 // pred_check
          %p192 = pneg %p67
        $region14: #{tpu_custom_call.1} parent=11 // pred_check_branch
          %194 = sbr.rel (%p192) target = $region16
        $region15: #{tpu_custom_call.1} parent=11 // pred_region
          %s196 = ssub.s32 256, 256
          %197 = vsyncadd [#allocation7], %s196
          %s199 = sshll.u32 [#allocation6], 4
          %s200 = int_to_ptr.vmem [resolvable:$true] %s199
          %202 = dma.hbm_to_vmem [thread:$0]  %s1, 256, %s200, [#allocation7]
        $region16: #{tpu_custom_call.1} parent=11 // pred_fallthru
          _
        // Predicated region
        $region17: #{tpu_custom_call.1} parent=11 // pred_check
          %p203 = pneg %p88
        $region18: #{tpu_custom_call.1} parent=11 // pred_check_branch
          %205 = sbr.rel (%p203) target = $region20
        $region19: #{tpu_custom_call.1} parent=11 // pred_region
          %s207 = ssub.s32 128, 128
          %208 = vsyncadd [#allocation7], %s207
          %s210 = sshll.u32 [#allocation8], 4
          %s211 = int_to_ptr.vmem [resolvable:$true] %s210
          %213 = dma.hbm_to_vmem [thread:$0]  %s2, 128, %s211, [#allocation7]
        $region20: #{tpu_custom_call.1} parent=11 // pred_fallthru
          _
        // Predicated region
        $region21: #{tpu_custom_call.1} parent=11 // pred_check
          %p214 = pneg %p109
        $region22: #{tpu_custom_call.1} parent=11 // pred_check_branch
          %216 = sbr.rel (%p214) target = $region24
        $region23: #{tpu_custom_call.1} parent=11 // pred_region
          _
        $region24: #{tpu_custom_call.1} parent=11 // pred_fallthru
          _
        // Predicated region
        $region25: #{tpu_custom_call.1} parent=11 // pred_check
          %p217 = pneg %p130
        $region26: #{tpu_custom_call.1} parent=11 // pred_check_branch
          %219 = sbr.rel (%p217) target = $region28
        $region27: #{tpu_custom_call.1} parent=11 // pred_region
          %s221 = ssub.s32 256, 256
          %222 = vsyncadd [#allocation10], %s221
          %s223 = sshll.u32 [#allocation9], 4
          %s224 = int_to_ptr.vmem [resolvable:$true] %s223
          %229 = dma.hbm_to_vmem [thread:$0]  %s4, 256, %s224, [#allocation10], 128, 128, 8
        $region28: #{tpu_custom_call.1} parent=11 // pred_fallthru
          _
        // Predicated region
        $region29: #{tpu_custom_call.1} parent=11 // pred_check
          %p230 = pneg %p151
        $region30: #{tpu_custom_call.1} parent=11 // pred_check_branch
          %232 = sbr.rel (%p230) target = $region32
        $region31: #{tpu_custom_call.1} parent=11 // pred_region
          _
        $region32: #{tpu_custom_call.1} parent=11 // pred_fallthru
          _
      $region12: #{tpu_custom_call.1} parent=5 // pred_fallthru
        _
      %p233 = scmp.lt.s32.totalorder %s20, 2
      // Predicated region
      $region33: #{tpu_custom_call.1} parent=5 // pred_check
        %p234 = pneg %p233
      $region34: #{tpu_custom_call.1} parent=5 // pred_check_branch
        %236 = sbr.rel (%p234) target = $region36
      $region35: #{tpu_custom_call.1} parent=5 // pred_region
        // Predicated region
        $region37: #{tpu_custom_call.1} parent=35 // pred_check
          %p237 = pneg %p40
        $region38: #{tpu_custom_call.1} parent=35 // pred_check_branch
          %239 = sbr.rel (%p237) target = $region40
        $region39: #{tpu_custom_call.1} parent=35 // pred_region
          %s240 = sand.u32 %s30, 1
          %s241 = scalar_lea.sflag [#allocation4], %s240
          %s242 = sand.u32 %s30, 1
          %s243 = smul.addr %s242, 2
          %s244 = scalar_lea.vmem [#allocation3], %s243
          %s245 = smul.u32 2, %s20
          %s247 = ssub.s32 32, 32
          %248 = vsyncadd %s241, %s247
          %s249 = smul.addr %s245, 16
          %s250 = scalar_lea.hbm %s0, %s249
          %s252 = sshll.u32 %s244, 4
          %s253 = int_to_ptr.vmem [resolvable:$true] %s252
          %255 = dma.hbm_to_vmem [thread:$0]  %s250, 32, %s253, %s241
        $region40: #{tpu_custom_call.1} parent=35 // pred_fallthru
          _
      $region36: #{tpu_custom_call.1} parent=5 // pred_fallthru
        _
      %p256 = scmp.le.s32.totalorder 1, %s20
      %p257 = scmp.lt.s32.totalorder %s20, 3
      %p258 = pnand %p256, %p257
      %p259 = pneg %p258
      // Predicated region
      $region41: #{tpu_custom_call.1} parent=5 // pred_check
        _
      $region42: #{tpu_custom_call.1} parent=5 // pred_check_branch
        %261 = sbr.rel (%p258) target = $region44
      $region43: #{tpu_custom_call.1} parent=5 // pred_region
        %s262 = ssub.s32 %s20, 1
        %s263 = sand.u32 %s33, 1
        %s264 = scalar_lea.sflag [#allocation4], %s263
        %s265 = sand.u32 %s33, 1
        %s266 = smul.addr %s265, 2
        %s267 = scalar_lea.vmem [#allocation3], %s266
        // Predicated region
        $region45: #{tpu_custom_call.1} parent=43 // pred_check
          %p268 = pneg %p46
        $region46: #{tpu_custom_call.1} parent=43 // pred_check_branch
          %270 = sbr.rel (%p268) target = $region48
        $region47: #{tpu_custom_call.1} parent=43 // pred_region
          %271 = dma.done %s264, 32
        $region48: #{tpu_custom_call.1} parent=43 // pred_fallthru
          _
        // Predicated region
        $region49: #{tpu_custom_call.1} parent=43 // pred_check
          %p272 = pneg %p67
        $region50: #{tpu_custom_call.1} parent=43 // pred_check_branch
          %274 = sbr.rel (%p272) target = $region52
        $region51: #{tpu_custom_call.1} parent=43 // pred_region
          %275 = dma.done [#allocation7], 256
        $region52: #{tpu_custom_call.1} parent=43 // pred_fallthru
          _
        // Predicated region
        $region53: #{tpu_custom_call.1} parent=43 // pred_check
          %p276 = pneg %p88
        $region54: #{tpu_custom_call.1} parent=43 // pred_check_branch
          %278 = sbr.rel (%p276) target = $region56
        $region55: #{tpu_custom_call.1} parent=43 // pred_region
          %279 = dma.done [#allocation7], 128
        $region56: #{tpu_custom_call.1} parent=43 // pred_fallthru
          _
        // Predicated region
        $region57: #{tpu_custom_call.1} parent=43 // pred_check
          %p280 = pneg %p130
        $region58: #{tpu_custom_call.1} parent=43 // pred_check_branch
          %282 = sbr.rel (%p280) target = $region60
        $region59: #{tpu_custom_call.1} parent=43 // pred_region
          %283 = dma.done [#allocation10], 256
        $region60: #{tpu_custom_call.1} parent=43 // pred_fallthru
          _
        %s284 = sand.u32 %s33, 1
        %s285 = scalar_lea.sflag [#allocation4], %s284
        %s286 = sand.u32 %s33, 1
        %s287 = smul.addr %s286, 2
        %s288 = scalar_lea.vmem [#allocation3], %s287
        %p289 = pneg %p46
        %p290 = pneg %p43
        %p291 = pneg %p67
        %p292 = pneg %p64
        %p293 = pneg %p88
        %p294 = pneg %p85
        %p295 = pneg %p109
        %p296 = pneg %p106
        %p297 = pneg %p130
        %p298 = pneg %p127
        %p299 = pneg %p151
        %p300 = pneg %p148
        %p301 = pneg %p177
        %p302 = pneg %p174
        %s303 = sand.u32 %s164, 1
        %s304 = scalar_lea.sflag [#allocation5], %s303
        %s305 = sand.u32 %s164, 1
        %s306 = smul.addr %s305, 2
        %s307 = scalar_lea.vmem [#allocation11], %s306
        %s308 = smul.u32 2, %s25
        %s309 = smul.u32 2, %s25
        %vm310 = vcmask 138240
        %311 = vst.msk [vmem:[#allocation2] sm:$0xff] %vm310, 0.0
        %312 = vst.msk [vmem:[#allocation2 + $0x18] sm:$0xff] %vm310, 0.0
        %vm313 = vcmask 277640
        %314 = vst.msk [vmem:[#allocation2 + $0x10] sm:$0xff] %vm313, 0.0
        %315 = vst.msk [vmem:[#allocation2 + $0x28] sm:$0xff] %vm313, 0.0
        %v316 = vld [vmem:[%s267] sm:$0x3]
        %318 = vrot.lane.b32.xlu0 %v316, 17
        %v319 = vpop.permute.xlu0 %318
        %v320 = vrot.slane %v319, 7
        %v321 = vsel %vm310, %v320, %v319
        %v323 = vlaneseq
        %vm324 = vcmp.ge.s32.totalorder %v323, 17
        %vm325 = vcmp.lt.s32.totalorder %v323, 273
        %vm326 = vmand %vm324, %vm325
        %327 = vst.msk [vmem:[#allocation2] ss:$8 sm:$0x7] %vm326, %v321
        %328 = vst.msk [vmem:[#allocation2] ss:$8 sm:$0x0] %vm326, %v321
        %v329 = vld [vmem:[#allocation8] sm:$0xff]
        %v330 = vld [vmem:[#allocation2] ss:$8 sm:$0x3]
        %v331 = vld [vmem:[#allocation6] ss:$8 sm:$0x3]
        %v332 = vmul.f32 %v330, %v331
        %v333 = vld [vmem:[#allocation2] ss:$8 sm:$0x7]
        %s334 = scalar_lea.vmem [#allocation6], 1
        %v335 = vld [vmem:[%s334] ss:$8 sm:$0x3]
        %337 = vrot.lane.b32.xlu0 %v335, 1
        %v338 = vpop.permute.xlu0 %337
        %v339 = vrot.slane %v338, 7
        %vm340 = vcmask 7168
        %v341 = vsel %vm340, %v339, %v338
        %v343 = vmul.f32 %v333, %v341
        %s344 = scalar_lea.vmem [#allocation6], 2
        %v345 = vld [vmem:[%s344] ss:$8 sm:$0x3]
        %347 = vrot.lane.b32.xlu0 %v345, 2
        %v348 = vpop.permute.xlu0 %347
        %v349 = vrot.slane %v348, 7
        %vm350 = vcmask 15360
        %v351 = vsel %vm350, %v349, %v348
        %v353 = vmul.f32 %v333, %v351
        %s354 = scalar_lea.vmem [#allocation6], 3
        %v355 = vld [vmem:[%s354] ss:$8 sm:$0x3]
        %357 = vrot.lane.b32.xlu0 %v355, 16
        %v358 = vpop.permute.xlu0 %357
        %v359 = vrot.slane %v358, 7
        %vm360 = vcmask 130048
        %v361 = vsel %vm360, %v359, %v358
        %v363 = vmul.f32 %v333, %v361
        %s364 = scalar_lea.vmem [#allocation6], 4
        %v365 = vld [vmem:[%s364] ss:$8 sm:$0x3]
        %367 = vrot.lane.b32.xlu0 %v365, 18
        %v368 = vpop.permute.xlu0 %367
        %v369 = vrot.slane %v368, 7
        %vm370 = vcmask 146432
        %v371 = vsel %vm370, %v369, %v368
        %v373 = vmul.f32 %v333, %v371
        %s374 = scalar_lea.vmem [#allocation6], 5
        %v375 = vld [vmem:[%s374] ss:$8 sm:$0x3]
        %377 = vrot.lane.b32.xlu0 %v375, 32
        %v378 = vpop.permute.xlu0 %377
        %v379 = vrot.slane %v378, 7
        %vm380 = vcmask 261120
        %v381 = vsel %vm380, %v379, %v378
        %v383 = vmul.f32 %v333, %v381
        %s384 = scalar_lea.vmem [#allocation6], 6
        %v385 = vld [vmem:[%s384] ss:$8 sm:$0x3]
        %387 = vrot.lane.b32.xlu0 %v385, 33
        %v388 = vpop.permute.xlu0 %387
        %v389 = vrot.slane %v388, 7
        %vm390 = vcmask 269312
        %v391 = vsel %vm390, %v389, %v388
        %v393 = vmul.f32 %v333, %v391
        %s394 = scalar_lea.vmem [#allocation6], 7
        %v395 = vld [vmem:[%s394] ss:$8 sm:$0x3]
        %397 = vrot.lane.b32.xlu0 %v395, 34
        %v398 = vpop.permute.xlu0 %397
        %v399 = vrot.slane %v398, 7
        %vm400 = vcmask 277504
        %v401 = vsel %vm400, %v399, %v398
        %v403 = vmul.f32 %v333, %v401
        %v405 = vlaneseq
        %v406 = vshrl.u32 %v405, 7
        %v407 = vsub.s32 0, %v406
        %v408 = vrot.slane %v332, %v407
        %v409 = vlaneseq
        %v410 = vshrl.u32 %v409, 7
        %v411 = vsub.s32 1, %v410
        %v412 = vrot.slane %v332, %v411
        %v416 = vlaneseq
        %v417 = vshrl.u32 %v416, 7
        %v418 = vsub.s32 0, %v417
        %v419 = vrot.slane %v343, %v418
        %v420 = vlaneseq
        %v421 = vshrl.u32 %v420, 7
        %v422 = vsub.s32 1, %v421
        %v423 = vrot.slane %v343, %v422
        %v424 = vlaneseq
        %v425 = vshrl.u32 %v424, 7
        %v426 = vsub.s32 2, %v425
        %v427 = vrot.slane %v343, %v426
        %428 = vrot.lane.b32.xlu0 %v419, 127
        %v429 = vpop.permute.xlu0 %428
        %430 = vrot.lane.b32.xlu0 %v423, 127
        %v431 = vpop.permute.xlu0 %430
        %432 = vrot.lane.b32.xlu0 %v427, 127
        %v433 = vpop.permute.xlu0 %432
        %vm434 = vcmask 1039360
        %v435 = vsel %vm434, %v429, %v431
        %v436 = vsel %vm434, %v431, %v433
        %v440 = vlaneseq
        %v441 = vshrl.u32 %v440, 7
        %v442 = vsub.s32 0, %v441
        %v443 = vrot.slane %v353, %v442
        %v444 = vlaneseq
        %v445 = vshrl.u32 %v444, 7
        %v446 = vsub.s32 1, %v445
        %v447 = vrot.slane %v353, %v446
        %v448 = vlaneseq
        %v449 = vshrl.u32 %v448, 7
        %v450 = vsub.s32 2, %v449
        %v451 = vrot.slane %v353, %v450
        %452 = vrot.lane.b32.xlu0 %v443, 126
        %v453 = vpop.permute.xlu0 %452
        %454 = vrot.lane.b32.xlu0 %v447, 126
        %v455 = vpop.permute.xlu0 %454
        %456 = vrot.lane.b32.xlu0 %v451, 126
        %v457 = vpop.permute.xlu0 %456
        %vm458 = vcmask 1031168
        %v459 = vsel %vm458, %v453, %v455
        %v460 = vsel %vm458, %v455, %v457
        %v464 = vlaneseq
        %v465 = vshrl.u32 %v464, 7
        %v466 = vsub.s32 0, %v465
        %v467 = vrot.slane %v363, %v466
        %v468 = vlaneseq
        %v469 = vshrl.u32 %v468, 7
        %v470 = vsub.s32 1, %v469
        %v471 = vrot.slane %v363, %v470
        %v472 = vlaneseq
        %v473 = vshrl.u32 %v472, 7
        %v474 = vsub.s32 2, %v473
        %v475 = vrot.slane %v363, %v474
        %476 = vrot.lane.b32.xlu0 %v467, 112
        %v477 = vpop.permute.xlu0 %476
        %478 = vrot.lane.b32.xlu0 %v471, 112
        %v479 = vpop.permute.xlu0 %478
        %480 = vrot.lane.b32.xlu0 %v475, 112
        %v481 = vpop.permute.xlu0 %480
        %vm482 = vcmask 916480
        %v483 = vsel %vm482, %v477, %v479
        %v484 = vsel %vm482, %v479, %v481
        %v488 = vlaneseq
        %v489 = vshrl.u32 %v488, 7
        %v490 = vsub.s32 0, %v489
        %v491 = vrot.slane %v333, %v490
        %v492 = vlaneseq
        %v493 = vshrl.u32 %v492, 7
        %v494 = vsub.s32 1, %v493
        %v495 = vrot.slane %v333, %v494
        %v496 = vlaneseq
        %v497 = vshrl.u32 %v496, 7
        %v498 = vsub.s32 2, %v497
        %v499 = vrot.slane %v333, %v498
        %500 = vrot.lane.b32.xlu0 %v491, 111
        %v501 = vpop.permute.xlu0 %500
        %502 = vrot.lane.b32.xlu0 %v495, 111
        %v503 = vpop.permute.xlu0 %502
        %504 = vrot.lane.b32.xlu0 %v499, 111
        %v505 = vpop.permute.xlu0 %504
        %vm506 = vcmask 908288
        %v507 = vsel %vm506, %v501, %v503
        %v508 = vsel %vm506, %v503, %v505
        %v512 = vlaneseq
        %v513 = vshrl.u32 %v512, 7
        %v514 = vsub.s32 0, %v513
        %v515 = vrot.slane %v373, %v514
        %v516 = vlaneseq
        %v517 = vshrl.u32 %v516, 7
        %v518 = vsub.s32 1, %v517
        %v519 = vrot.slane %v373, %v518
        %v520 = vlaneseq
        %v521 = vshrl.u32 %v520, 7
        %v522 = vsub.s32 2, %v521
        %v523 = vrot.slane %v373, %v522
        %524 = vrot.lane.b32.xlu0 %v515, 110
        %v525 = vpop.permute.xlu0 %524
        %526 = vrot.lane.b32.xlu0 %v519, 110
        %v527 = vpop.permute.xlu0 %526
        %528 = vrot.lane.b32.xlu0 %v523, 110
        %v529 = vpop.permute.xlu0 %528
        %vm530 = vcmask 900096
        %v531 = vsel %vm530, %v525, %v527
        %v532 = vsel %vm530, %v527, %v529
        %v536 = vlaneseq
        %v537 = vshrl.u32 %v536, 7
        %v538 = vsub.s32 0, %v537
        %v539 = vrot.slane %v383, %v538
        %v540 = vlaneseq
        %v541 = vshrl.u32 %v540, 7
        %v542 = vsub.s32 1, %v541
        %v543 = vrot.slane %v383, %v542
        %v544 = vlaneseq
        %v545 = vshrl.u32 %v544, 7
        %v546 = vsub.s32 2, %v545
        %v547 = vrot.slane %v383, %v546
        %548 = vrot.lane.b32.xlu0 %v539, 96
        %v549 = vpop.permute.xlu0 %548
        %550 = vrot.lane.b32.xlu0 %v543, 96
        %v551 = vpop.permute.xlu0 %550
        %552 = vrot.lane.b32.xlu0 %v547, 96
        %v553 = vpop.permute.xlu0 %552
        %vm554 = vcmask 785408
        %v555 = vsel %vm554, %v549, %v551
        %v556 = vsel %vm554, %v551, %v553
        %v560 = vlaneseq
        %v561 = vshrl.u32 %v560, 7
        %v562 = vsub.s32 0, %v561
        %v563 = vrot.slane %v393, %v562
        %v564 = vlaneseq
        %v565 = vshrl.u32 %v564, 7
        %v566 = vsub.s32 1, %v565
        %v567 = vrot.slane %v393, %v566
        %v568 = vlaneseq
        %v569 = vshrl.u32 %v568, 7
        %v570 = vsub.s32 2, %v569
        %v571 = vrot.slane %v393, %v570
        %572 = vrot.lane.b32.xlu0 %v563, 95
        %v573 = vpop.permute.xlu0 %572
        %574 = vrot.lane.b32.xlu0 %v567, 95
        %v575 = vpop.permute.xlu0 %574
        %576 = vrot.lane.b32.xlu0 %v571, 95
        %v577 = vpop.permute.xlu0 %576
        %vm578 = vcmask 777216
        %v579 = vsel %vm578, %v573, %v575
        %v580 = vsel %vm578, %v575, %v577
        %v584 = vlaneseq
        %v585 = vshrl.u32 %v584, 7
        %v586 = vsub.s32 0, %v585
        %v587 = vrot.slane %v403, %v586
        %v588 = vlaneseq
        %v589 = vshrl.u32 %v588, 7
        %v590 = vsub.s32 1, %v589
        %v591 = vrot.slane %v403, %v590
        %v592 = vlaneseq
        %v593 = vshrl.u32 %v592, 7
        %v594 = vsub.s32 2, %v593
        %v595 = vrot.slane %v403, %v594
        %596 = vrot.lane.b32.xlu0 %v587, 94
        %v597 = vpop.permute.xlu0 %596
        %598 = vrot.lane.b32.xlu0 %v591, 94
        %v599 = vpop.permute.xlu0 %598
        %600 = vrot.lane.b32.xlu0 %v595, 94
        %v601 = vpop.permute.xlu0 %600
        %vm602 = vcmask 769024
        %v603 = vsel %vm602, %v597, %v599
        %v604 = vsel %vm602, %v599, %v601
        %vm607 = vcmask 1040384
        %v608 = vsel %vm607, %v408, %v435
        %v609 = vsel %vm607, %v412, %v436
        %vm610 = vcmask 1041408
        %v611 = vsel %vm610, %v608, %v459
        %v612 = vsel %vm610, %v609, %v460
        %vm613 = vcmask 1042432
        %v614 = vsel %vm613, %v611, %v483
        %v615 = vsel %vm613, %v612, %v484
        %vm616 = vcmask 1043456
        %v617 = vsel %vm616, %v614, %v507
        %v618 = vsel %vm616, %v615, %v508
        %vm619 = vcmask 1044480
        %v620 = vsel %vm619, %v617, %v531
        %v621 = vsel %vm619, %v618, %v532
        %vm622 = vcmask 1045504
        %v623 = vsel %vm622, %v620, %v555
        %v624 = vsel %vm622, %v621, %v556
        %vm625 = vcmask 1046528
        %v626 = vsel %vm625, %v623, %v579
        %v627 = vsel %vm625, %v624, %v580
        %v628 = vsel %vm607, %v603, 1.0
        %v629 = vsel %vm607, %v604, 1.0
        %vm630 = vcmask 80896
        %v632 = vsel %vm630, %v329, 0
        %v635 = vsel %vm610, %v628, 0
        %v638 = vsel %vm610, %v629, 0
        %640 = vmatprep.subr.mxu0 %v627
        %641 = vmatpush1.msra.mxu0 %v626
        %642 = vmatprep.subr.mxu0 %v638
        %643 = vmatpush1.msra.mxu0 %v635
        %644 = vmatprep.subr.mxu0 0.0
        %645 = vmatpush1.msra.mxu0 0.0
        %646 = vmatprep.subr.mxu0 0.0
        %647 = vmatpush1.msra.mxu0 0.0
        %648 = vmatprep.subr.mxu0 0.0
        %649 = vmatpush1.msra.mxu0 0.0
        %650 = vmatprep.subr.mxu0 0.0
        %651 = vmatpush1.msra.mxu0 0.0
        %652 = vmatprep.subr.mxu0 0.0
        %653 = vmatpush1.msra.mxu0 0.0
        %654 = vmatprep.subr.mxu0 0.0
        %655 = vmatpush1.msra.mxu0 0.0
        %656 = vmatprep.subr.mxu0 0.0
        %657 = vmatpush1.msra.mxu0 0.0
        %658 = vmatprep.subr.mxu0 0.0
        %659 = vmatpush1.msra.mxu0 0.0
        %660 = vmatprep.subr.mxu0 0.0
        %661 = vmatpush1.msra.mxu0 0.0
        %662 = vmatprep.subr.mxu0 0.0
        %663 = vmatpush1.msra.mxu0 0.0
        %664 = vmatprep.subr.mxu0 0.0
        %665 = vmatpush1.msra.mxu0 0.0
        %666 = vmatprep.subr.mxu0 0.0
        %667 = vmatpush1.msra.mxu0 0.0
        %668 = vmatprep.subr.mxu0 0.0
        %669 = vmatpush1.msra.mxu0 0.0
        %670 = vmatprep.subr.mxu0 0.0
        %671 = vmatpush1.msra.mxu0 0.0
        %672 = vmatprep.subr.mxu0 0.0
        %673 = vmatpush1.msra.mxu0 0.0
        %674 = vmatprep.subr.mxu0 0.0
        %675 = vmatpush1.msra.mxu0 0.0
        %676 = vmatprep.subr.mxu0 0.0
        %677 = vmatpush1.msra.mxu0 0.0
        %678 = vmatprep.subr.mxu0 0.0
        %679 = vmatpush1.msra.mxu0 0.0
        %680 = vmatprep.subr.mxu0 0.0
        %681 = vmatpush1.msra.mxu0 0.0
        %682 = vmatprep.subr.mxu0 0.0
        %683 = vmatpush1.msra.mxu0 0.0
        %684 = vmatprep.subr.mxu0 0.0
        %685 = vmatpush1.msra.mxu0 0.0
        %686 = vmatprep.subr.mxu0 0.0
        %687 = vmatpush1.msra.mxu0 0.0
        %688 = vmatprep.subr.mxu0 0.0
        %689 = vmatpush1.msra.mxu0 0.0
        %690 = vmatprep.subr.mxu0 0.0
        %691 = vmatpush1.msra.mxu0 0.0
        %692 = vmatprep.subr.mxu0 0.0
        %693 = vmatpush1.msra.mxu0 0.0
        %694 = vmatprep.subr.mxu0 0.0
        %695 = vmatpush1.msra.mxu0 0.0
        %696 = vmatprep.subr.mxu0 0.0
        %697 = vmatpush1.msra.mxu0 0.0
        %698 = vmatprep.subr.mxu0 0.0
        %699 = vmatpush1.msra.mxu0 0.0
        %700 = vmatprep.subr.mxu0 0.0
        %701 = vmatpush1.msra.mxu0 0.0
        %702 = vmatprep.subr.mxu0 0.0
        %703 = vmatpush1.msra.mxu0 0.0
        %704 = vmatprep.mubr.f32.mxu0 0.0
        %705 = vmatmul.mubr.f32.gmra.mrb[0].mxu0 %v632
        %v706 = vpop.f32.mrb[0].mxu0
        %v707 = vadd.f32 0.0, %v706
        %v708 = vpop.f32.mrb[0].mxu0
        %v709 = vadd.f32 0.0, %v708
        %710 = vdwg.mxu0
        %713 = vrot.lane.b32.xlu0 %v707, 17
        %v714 = vpop.permute.xlu0 %713
        %715 = vrot.lane.b32.xlu0 %v709, 17
        %v716 = vpop.permute.xlu0 %715
        %v717 = vsel %vm310, %v714, %v716
        %vm721 = vcmask 1047688
        %722 = vst.msk [vmem:[#allocation2] sm:$0xff] %vm721, %v714
        %723 = vst [vmem:[#allocation2 + $0x8] sm:$0xff] %v717
        %724 = vst.msk [vmem:[#allocation2 + $0x10] sm:$0xff] %vm310, %v716
        %v725 = vld [vmem:[%s3] sm:$0xff]
        %v726 = vld [vmem:[#allocation2] sm:$0xff]
        %v727 = vld [vmem:[#allocation2 + $0x8] sm:$0xff]
        %v728 = vld [vmem:[#allocation6] ss:$8 sm:$0x3]
        %v730 = vlaneseq
        %v731 = vshrl.u32 %v730, 7
        %v732 = vsub.s32 0, %v731
        %v733 = vrot.slane %v728, %v732
        %v734 = vlaneseq
        %v735 = vshrl.u32 %v734, 7
        %v736 = vsub.s32 1, %v735
        %v737 = vrot.slane %v728, %v736
        %v740 = vmul.f32 %v726, %v733
        %v741 = vmul.f32 %v727, %v737
        %v742 = vld [vmem:[#allocation2 + $0x10] sm:$0xff]
        %v743 = vld [vmem:[%s334] ss:$8 sm:$0x3]
        %v745 = vlaneseq
        %v746 = vshrl.u32 %v745, 7
        %v747 = vsub.s32 0, %v746
        %v748 = vrot.slane %v743, %v747
        %v749 = vlaneseq
        %v750 = vshrl.u32 %v749, 7
        %v751 = vsub.s32 1, %v750
        %v752 = vrot.slane %v743, %v751
        %753 = vrot.lane.b32.xlu0 %v748, 1
        %v754 = vpop.permute.xlu0 %753
        %755 = vrot.lane.b32.xlu0 %v752, 1
        %v756 = vpop.permute.xlu0 %755
        %v757 = vsel %vm340, %v754, %v756
        %v761 = vmul.f32 %v726, %v754
        %v762 = vmul.f32 %v727, %v757
        %v763 = vmul.f32 %v742, %v756
        %v764 = vld [vmem:[%s344] ss:$8 sm:$0x3]
        %v766 = vlaneseq
        %v767 = vshrl.u32 %v766, 7
        %v768 = vsub.s32 0, %v767
        %v769 = vrot.slane %v764, %v768
        %v770 = vlaneseq
        %v771 = vshrl.u32 %v770, 7
        %v772 = vsub.s32 1, %v771
        %v773 = vrot.slane %v764, %v772
        %774 = vrot.lane.b32.xlu0 %v769, 2
        %v775 = vpop.permute.xlu0 %774
        %776 = vrot.lane.b32.xlu0 %v773, 2
        %v777 = vpop.permute.xlu0 %776
        %v778 = vsel %vm350, %v775, %v777
        %v782 = vmul.f32 %v726, %v775
        %v783 = vmul.f32 %v727, %v778
        %v784 = vmul.f32 %v742, %v777
        %v785 = vld [vmem:[%s354] ss:$8 sm:$0x3]
        %v787 = vlaneseq
        %v788 = vshrl.u32 %v787, 7
        %v789 = vsub.s32 0, %v788
        %v790 = vrot.slane %v785, %v789
        %v791 = vlaneseq
        %v792 = vshrl.u32 %v791, 7
        %v793 = vsub.s32 1, %v792
        %v794 = vrot.slane %v785, %v793
        %795 = vrot.lane.b32.xlu0 %v790, 16
        %v796 = vpop.permute.xlu0 %795
        %797 = vrot.lane.b32.xlu0 %v794, 16
        %v798 = vpop.permute.xlu0 %797
        %v799 = vsel %vm360, %v796, %v798
        %v803 = vmul.f32 %v726, %v796
        %v804 = vmul.f32 %v727, %v799
        %v805 = vmul.f32 %v742, %v798
        %v806 = vld [vmem:[%s364] ss:$8 sm:$0x3]
        %v808 = vlaneseq
        %v809 = vshrl.u32 %v808, 7
        %v810 = vsub.s32 0, %v809
        %v811 = vrot.slane %v806, %v810
        %v812 = vlaneseq
        %v813 = vshrl.u32 %v812, 7
        %v814 = vsub.s32 1, %v813
        %v815 = vrot.slane %v806, %v814
        %816 = vrot.lane.b32.xlu0 %v811, 18
        %v817 = vpop.permute.xlu0 %816
        %818 = vrot.lane.b32.xlu0 %v815, 18
        %v819 = vpop.permute.xlu0 %818
        %v820 = vsel %vm370, %v817, %v819
        %v824 = vmul.f32 %v726, %v817
        %v825 = vmul.f32 %v727, %v820
        %v826 = vmul.f32 %v742, %v819
        %v827 = vld [vmem:[%s374] ss:$8 sm:$0x3]
        %v829 = vlaneseq
        %v830 = vshrl.u32 %v829, 7
        %v831 = vsub.s32 0, %v830
        %v832 = vrot.slane %v827, %v831
        %v833 = vlaneseq
        %v834 = vshrl.u32 %v833, 7
        %v835 = vsub.s32 1, %v834
        %v836 = vrot.slane %v827, %v835
        %837 = vrot.lane.b32.xlu0 %v832, 32
        %v838 = vpop.permute.xlu0 %837
        %839 = vrot.lane.b32.xlu0 %v836, 32
        %v840 = vpop.permute.xlu0 %839
        %v841 = vsel %vm380, %v838, %v840
        %v845 = vmul.f32 %v726, %v838
        %v846 = vmul.f32 %v727, %v841
        %v847 = vmul.f32 %v742, %v840
        %v848 = vld [vmem:[%s384] ss:$8 sm:$0x3]
        %v850 = vlaneseq
        %v851 = vshrl.u32 %v850, 7
        %v852 = vsub.s32 0, %v851
        %v853 = vrot.slane %v848, %v852
        %v854 = vlaneseq
        %v855 = vshrl.u32 %v854, 7
        %v856 = vsub.s32 1, %v855
        %v857 = vrot.slane %v848, %v856
        %858 = vrot.lane.b32.xlu0 %v853, 33
        %v859 = vpop.permute.xlu0 %858
        %860 = vrot.lane.b32.xlu0 %v857, 33
        %v861 = vpop.permute.xlu0 %860
        %v862 = vsel %vm390, %v859, %v861
        %v866 = vmul.f32 %v726, %v859
        %v867 = vmul.f32 %v727, %v862
        %v868 = vmul.f32 %v742, %v861
        %v869 = vld [vmem:[%s394] ss:$8 sm:$0x3]
        %v871 = vlaneseq
        %v872 = vshrl.u32 %v871, 7
        %v873 = vsub.s32 0, %v872
        %v874 = vrot.slane %v869, %v873
        %v875 = vlaneseq
        %v876 = vshrl.u32 %v875, 7
        %v877 = vsub.s32 1, %v876
        %v878 = vrot.slane %v869, %v877
        %879 = vrot.lane.b32.xlu0 %v874, 34
        %v880 = vpop.permute.xlu0 %879
        %881 = vrot.lane.b32.xlu0 %v878, 34
        %v882 = vpop.permute.xlu0 %881
        %v883 = vsel %vm400, %v880, %v882
        %v887 = vmul.f32 %v726, %v880
        %v888 = vmul.f32 %v727, %v883
        %v889 = vmul.f32 %v742, %v882
        %893 = vrot.lane.b32.xlu0 %v761, 127
        %v894 = vpop.permute.xlu0 %893
        %895 = vrot.lane.b32.xlu0 %v762, 127
        %v896 = vpop.permute.xlu0 %895
        %897 = vrot.lane.b32.xlu0 %v763, 127
        %v898 = vpop.permute.xlu0 %897
        %v899 = vsel %vm434, %v894, %v896
        %v900 = vsel %vm434, %v896, %v898
        %906 = vrot.lane.b32.xlu0 %v782, 126
        %v907 = vpop.permute.xlu0 %906
        %908 = vrot.lane.b32.xlu0 %v783, 126
        %v909 = vpop.permute.xlu0 %908
        %910 = vrot.lane.b32.xlu0 %v784, 126
        %v911 = vpop.permute.xlu0 %910
        %v912 = vsel %vm458, %v907, %v909
        %v913 = vsel %vm458, %v909, %v911
        %919 = vrot.lane.b32.xlu0 %v803, 112
        %v920 = vpop.permute.xlu0 %919
        %921 = vrot.lane.b32.xlu0 %v804, 112
        %v922 = vpop.permute.xlu0 %921
        %923 = vrot.lane.b32.xlu0 %v805, 112
        %v924 = vpop.permute.xlu0 %923
        %v925 = vsel %vm482, %v920, %v922
        %v926 = vsel %vm482, %v922, %v924
        %932 = vrot.lane.b32.xlu0 %v726, 111
        %v933 = vpop.permute.xlu0 %932
        %934 = vrot.lane.b32.xlu0 %v727, 111
        %v935 = vpop.permute.xlu0 %934
        %936 = vrot.lane.b32.xlu0 %v742, 111
        %v937 = vpop.permute.xlu0 %936
        %v938 = vsel %vm506, %v933, %v935
        %v939 = vsel %vm506, %v935, %v937
        %945 = vrot.lane.b32.xlu0 %v824, 110
        %v946 = vpop.permute.xlu0 %945
        %947 = vrot.lane.b32.xlu0 %v825, 110
        %v948 = vpop.permute.xlu0 %947
        %949 = vrot.lane.b32.xlu0 %v826, 110
        %v950 = vpop.permute.xlu0 %949
        %v951 = vsel %vm530, %v946, %v948
        %v952 = vsel %vm530, %v948, %v950
        %958 = vrot.lane.b32.xlu0 %v845, 96
        %v959 = vpop.permute.xlu0 %958
        %960 = vrot.lane.b32.xlu0 %v846, 96
        %v961 = vpop.permute.xlu0 %960
        %962 = vrot.lane.b32.xlu0 %v847, 96
        %v963 = vpop.permute.xlu0 %962
        %v964 = vsel %vm554, %v959, %v961
        %v965 = vsel %vm554, %v961, %v963
        %971 = vrot.lane.b32.xlu0 %v866, 95
        %v972 = vpop.permute.xlu0 %971
        %973 = vrot.lane.b32.xlu0 %v867, 95
        %v974 = vpop.permute.xlu0 %973
        %975 = vrot.lane.b32.xlu0 %v868, 95
        %v976 = vpop.permute.xlu0 %975
        %v977 = vsel %vm578, %v972, %v974
        %v978 = vsel %vm578, %v974, %v976
        %984 = vrot.lane.b32.xlu0 %v887, 94
        %v985 = vpop.permute.xlu0 %984
        %986 = vrot.lane.b32.xlu0 %v888, 94
        %v987 = vpop.permute.xlu0 %986
        %988 = vrot.lane.b32.xlu0 %v889, 94
        %v989 = vpop.permute.xlu0 %988
        %v990 = vsel %vm602, %v985, %v987
        %v991 = vsel %vm602, %v987, %v989
        %vm994 = vcmask 596992
        %v996 = vsel %vm994, %v725, 0
        %v999 = vsel %vm607, 1.0, 0
        %1001 = vmatprep.subr.mxu0 %v741
        %1002 = vmatpush1.msra.mxu0 %v740
        %1003 = vmatprep.subr.mxu0 %v900
        %1004 = vmatpush1.msra.mxu0 %v899
        %1005 = vmatprep.subr.mxu0 %v913
        %1006 = vmatpush1.msra.mxu0 %v912
        %1007 = vmatprep.subr.mxu0 %v926
        %1008 = vmatpush1.msra.mxu0 %v925
        %1009 = vmatprep.subr.mxu0 %v939
        %1010 = vmatpush1.msra.mxu0 %v938
        %1011 = vmatprep.subr.mxu0 %v952
        %1012 = vmatpush1.msra.mxu0 %v951
        %1013 = vmatprep.subr.mxu0 %v965
        %1014 = vmatpush1.msra.mxu0 %v964
        %1015 = vmatprep.subr.mxu0 %v978
        %1016 = vmatpush1.msra.mxu0 %v977
        %1017 = vmatprep.subr.mxu0 %v991
        %1018 = vmatpush1.msra.mxu0 %v990
        %1019 = vmatprep.subr.mxu0 %v999
        %1020 = vmatpush1.msra.mxu0 %v999
        %1021 = vmatprep.subr.mxu0 0.0
        %1022 = vmatpush1.msra.mxu0 0.0
        %1023 = vmatprep.subr.mxu0 0.0
        %1024 = vmatpush1.msra.mxu0 0.0
        %1025 = vmatprep.subr.mxu0 0.0
        %1026 = vmatpush1.msra.mxu0 0.0
        %1027 = vmatprep.subr.mxu0 0.0
        %1028 = vmatpush1.msra.mxu0 0.0
        %1029 = vmatprep.subr.mxu0 0.0
        %1030 = vmatpush1.msra.mxu0 0.0
        %1031 = vmatprep.subr.mxu0 0.0
        %1032 = vmatpush1.msra.mxu0 0.0
        %1033 = vmatprep.subr.mxu0 0.0
        %1034 = vmatpush1.msra.mxu0 0.0
        %1035 = vmatprep.subr.mxu0 0.0
        %1036 = vmatpush1.msra.mxu0 0.0
        %1037 = vmatprep.subr.mxu0 0.0
        %1038 = vmatpush1.msra.mxu0 0.0
        %1039 = vmatprep.subr.mxu0 0.0
        %1040 = vmatpush1.msra.mxu0 0.0
        %1041 = vmatprep.subr.mxu0 0.0
        %1042 = vmatpush1.msra.mxu0 0.0
        %1043 = vmatprep.subr.mxu0 0.0
        %1044 = vmatpush1.msra.mxu0 0.0
        %1045 = vmatprep.subr.mxu0 0.0
        %1046 = vmatpush1.msra.mxu0 0.0
        %1047 = vmatprep.subr.mxu0 0.0
        %1048 = vmatpush1.msra.mxu0 0.0
        %1049 = vmatprep.subr.mxu0 0.0
        %1050 = vmatpush1.msra.mxu0 0.0
        %1051 = vmatprep.subr.mxu0 0.0
        %1052 = vmatpush1.msra.mxu0 0.0
        %1053 = vmatprep.subr.mxu0 0.0
        %1054 = vmatpush1.msra.mxu0 0.0
        %1055 = vmatprep.subr.mxu0 0.0
        %1056 = vmatpush1.msra.mxu0 0.0
        %1057 = vmatprep.subr.mxu0 0.0
        %1058 = vmatpush1.msra.mxu0 0.0
        %1059 = vmatprep.subr.mxu0 0.0
        %1060 = vmatpush1.msra.mxu0 0.0
        %1061 = vmatprep.subr.mxu0 0.0
        %1062 = vmatpush1.msra.mxu0 0.0
        %1063 = vmatprep.subr.mxu0 0.0
        %1064 = vmatpush1.msra.mxu0 0.0
        %1065 = vmatprep.mubr.f32.mxu0 0.0
        %1066 = vmatmul.mubr.f32.gmra.mrb[0].mxu0 %v996
        %v1067 = vpop.f32.mrb[0].mxu0
        %v1068 = vadd.f32 0.0, %v1067
        %v1069 = vpop.f32.mrb[0].mxu0
        %v1070 = vadd.f32 0.0, %v1069
        %1071 = vdwg.mxu0
        %1074 = vrot.lane.b32.xlu0 %v1068, 17
        %v1075 = vpop.permute.xlu0 %1074
        %1076 = vrot.lane.b32.xlu0 %v1070, 17
        %v1077 = vpop.permute.xlu0 %1076
        %v1078 = vsel %vm310, %v1075, %v1077
        %1082 = vst.msk [vmem:[#allocation2] sm:$0xff] %vm721, %v1075
        %1083 = vst [vmem:[#allocation2 + $0x8] sm:$0xff] %v1078
        %1084 = vst.msk [vmem:[#allocation2 + $0x10] sm:$0xff] %vm310, %v1077
        %v1085 = vld [vmem:[#allocation9] sm:$0xff]
        %v1086 = vld [vmem:[#allocation9 + $0x8] sm:$0xff]
        %v1087 = vld [vmem:[#allocation2] sm:$0xff]
        %v1088 = vld [vmem:[#allocation2 + $0x8] sm:$0xff]
        %v1089 = vld [vmem:[#allocation6] ss:$8 sm:$0x3]
        %v1091 = vlaneseq
        %v1092 = vshrl.u32 %v1091, 7
        %v1093 = vsub.s32 0, %v1092
        %v1094 = vrot.slane %v1089, %v1093
        %v1095 = vlaneseq
        %v1096 = vshrl.u32 %v1095, 7
        %v1097 = vsub.s32 1, %v1096
        %v1098 = vrot.slane %v1089, %v1097
        %v1101 = vmul.f32 %v1087, %v1094
        %v1102 = vmul.f32 %v1088, %v1098
        %v1103 = vld [vmem:[#allocation2 + $0x10] sm:$0xff]
        %v1104 = vld [vmem:[%s334] ss:$8 sm:$0x3]
        %v1106 = vlaneseq
        %v1107 = vshrl.u32 %v1106, 7
        %v1108 = vsub.s32 0, %v1107
        %v1109 = vrot.slane %v1104, %v1108
        %v1110 = vlaneseq
        %v1111 = vshrl.u32 %v1110, 7
        %v1112 = vsub.s32 1, %v1111
        %v1113 = vrot.slane %v1104, %v1112
        %1114 = vrot.lane.b32.xlu0 %v1109, 1
        %v1115 = vpop.permute.xlu0 %1114
        %1116 = vrot.lane.b32.xlu0 %v1113, 1
        %v1117 = vpop.permute.xlu0 %1116
        %v1118 = vsel %vm340, %v1115, %v1117
        %v1122 = vmul.f32 %v1087, %v1115
        %v1123 = vmul.f32 %v1088, %v1118
        %v1124 = vmul.f32 %v1103, %v1117
        %v1125 = vld [vmem:[%s344] ss:$8 sm:$0x3]
        %v1127 = vlaneseq
        %v1128 = vshrl.u32 %v1127, 7
        %v1129 = vsub.s32 0, %v1128
        %v1130 = vrot.slane %v1125, %v1129
        %v1131 = vlaneseq
        %v1132 = vshrl.u32 %v1131, 7
        %v1133 = vsub.s32 1, %v1132
        %v1134 = vrot.slane %v1125, %v1133
        %1135 = vrot.lane.b32.xlu0 %v1130, 2
        %v1136 = vpop.permute.xlu0 %1135
        %1137 = vrot.lane.b32.xlu0 %v1134, 2
        %v1138 = vpop.permute.xlu0 %1137
        %v1139 = vsel %vm350, %v1136, %v1138
        %v1143 = vmul.f32 %v1087, %v1136
        %v1144 = vmul.f32 %v1088, %v1139
        %v1145 = vmul.f32 %v1103, %v1138
        %v1146 = vld [vmem:[%s354] ss:$8 sm:$0x3]
        %v1148 = vlaneseq
        %v1149 = vshrl.u32 %v1148, 7
        %v1150 = vsub.s32 0, %v1149
        %v1151 = vrot.slane %v1146, %v1150
        %v1152 = vlaneseq
        %v1153 = vshrl.u32 %v1152, 7
        %v1154 = vsub.s32 1, %v1153
        %v1155 = vrot.slane %v1146, %v1154
        %1156 = vrot.lane.b32.xlu0 %v1151, 16
        %v1157 = vpop.permute.xlu0 %1156
        %1158 = vrot.lane.b32.xlu0 %v1155, 16
        %v1159 = vpop.permute.xlu0 %1158
        %v1160 = vsel %vm360, %v1157, %v1159
        %v1164 = vmul.f32 %v1087, %v1157
        %v1165 = vmul.f32 %v1088, %v1160
        %v1166 = vmul.f32 %v1103, %v1159
        %v1167 = vld [vmem:[%s364] ss:$8 sm:$0x3]
        %v1169 = vlaneseq
        %v1170 = vshrl.u32 %v1169, 7
        %v1171 = vsub.s32 0, %v1170
        %v1172 = vrot.slane %v1167, %v1171
        %v1173 = vlaneseq
        %v1174 = vshrl.u32 %v1173, 7
        %v1175 = vsub.s32 1, %v1174
        %v1176 = vrot.slane %v1167, %v1175
        %1177 = vrot.lane.b32.xlu0 %v1172, 18
        %v1178 = vpop.permute.xlu0 %1177
        %1179 = vrot.lane.b32.xlu0 %v1176, 18
        %v1180 = vpop.permute.xlu0 %1179
        %v1181 = vsel %vm370, %v1178, %v1180
        %v1185 = vmul.f32 %v1087, %v1178
        %v1186 = vmul.f32 %v1088, %v1181
        %v1187 = vmul.f32 %v1103, %v1180
        %v1188 = vld [vmem:[%s374] ss:$8 sm:$0x3]
        %v1190 = vlaneseq
        %v1191 = vshrl.u32 %v1190, 7
        %v1192 = vsub.s32 0, %v1191
        %v1193 = vrot.slane %v1188, %v1192
        %v1194 = vlaneseq
        %v1195 = vshrl.u32 %v1194, 7
        %v1196 = vsub.s32 1, %v1195
        %v1197 = vrot.slane %v1188, %v1196
        %1198 = vrot.lane.b32.xlu0 %v1193, 32
        %v1199 = vpop.permute.xlu0 %1198
        %1200 = vrot.lane.b32.xlu0 %v1197, 32
        %v1201 = vpop.permute.xlu0 %1200
        %v1202 = vsel %vm380, %v1199, %v1201
        %v1206 = vmul.f32 %v1087, %v1199
        %v1207 = vmul.f32 %v1088, %v1202
        %v1208 = vmul.f32 %v1103, %v1201
        %v1209 = vld [vmem:[%s384] ss:$8 sm:$0x3]
        %v1211 = vlaneseq
        %v1212 = vshrl.u32 %v1211, 7
        %v1213 = vsub.s32 0, %v1212
        %v1214 = vrot.slane %v1209, %v1213
        %v1215 = vlaneseq
        %v1216 = vshrl.u32 %v1215, 7
        %v1217 = vsub.s32 1, %v1216
        %v1218 = vrot.slane %v1209, %v1217
        %1219 = vrot.lane.b32.xlu0 %v1214, 33
        %v1220 = vpop.permute.xlu0 %1219
        %1221 = vrot.lane.b32.xlu0 %v1218, 33
        %v1222 = vpop.permute.xlu0 %1221
        %v1223 = vsel %vm390, %v1220, %v1222
        %v1227 = vmul.f32 %v1087, %v1220
        %v1228 = vmul.f32 %v1088, %v1223
        %v1229 = vmul.f32 %v1103, %v1222
        %v1230 = vld [vmem:[%s394] ss:$8 sm:$0x3]
        %v1232 = vlaneseq
        %v1233 = vshrl.u32 %v1232, 7
        %v1234 = vsub.s32 0, %v1233
        %v1235 = vrot.slane %v1230, %v1234
        %v1236 = vlaneseq
        %v1237 = vshrl.u32 %v1236, 7
        %v1238 = vsub.s32 1, %v1237
        %v1239 = vrot.slane %v1230, %v1238
        %1240 = vrot.lane.b32.xlu0 %v1235, 34
        %v1241 = vpop.permute.xlu0 %1240
        %1242 = vrot.lane.b32.xlu0 %v1239, 34
        %v1243 = vpop.permute.xlu0 %1242
        %v1244 = vsel %vm400, %v1241, %v1243
        %v1248 = vmul.f32 %v1087, %v1241
        %v1249 = vmul.f32 %v1088, %v1244
        %v1250 = vmul.f32 %v1103, %v1243
        %1254 = vrot.lane.b32.xlu0 %v1122, 127
        %v1255 = vpop.permute.xlu0 %1254
        %1256 = vrot.lane.b32.xlu0 %v1123, 127
        %v1257 = vpop.permute.xlu0 %1256
        %1258 = vrot.lane.b32.xlu0 %v1124, 127
        %v1259 = vpop.permute.xlu0 %1258
        %v1260 = vsel %vm434, %v1255, %v1257
        %v1261 = vsel %vm434, %v1257, %v1259
        %1267 = vrot.lane.b32.xlu0 %v1143, 126
        %v1268 = vpop.permute.xlu0 %1267
        %1269 = vrot.lane.b32.xlu0 %v1144, 126
        %v1270 = vpop.permute.xlu0 %1269
        %1271 = vrot.lane.b32.xlu0 %v1145, 126
        %v1272 = vpop.permute.xlu0 %1271
        %v1273 = vsel %vm458, %v1268, %v1270
        %v1274 = vsel %vm458, %v1270, %v1272
        %1280 = vrot.lane.b32.xlu0 %v1164, 112
        %v1281 = vpop.permute.xlu0 %1280
        %1282 = vrot.lane.b32.xlu0 %v1165, 112
        %v1283 = vpop.permute.xlu0 %1282
        %1284 = vrot.lane.b32.xlu0 %v1166, 112
        %v1285 = vpop.permute.xlu0 %1284
        %v1286 = vsel %vm482, %v1281, %v1283
        %v1287 = vsel %vm482, %v1283, %v1285
        %1293 = vrot.lane.b32.xlu0 %v1087, 111
        %v1294 = vpop.permute.xlu0 %1293
        %1295 = vrot.lane.b32.xlu0 %v1088, 111
        %v1296 = vpop.permute.xlu0 %1295
        %1297 = vrot.lane.b32.xlu0 %v1103, 111
        %v1298 = vpop.permute.xlu0 %1297
        %v1299 = vsel %vm506, %v1294, %v1296
        %v1300 = vsel %vm506, %v1296, %v1298
        %1306 = vrot.lane.b32.xlu0 %v1185, 110
        %v1307 = vpop.permute.xlu0 %1306
        %1308 = vrot.lane.b32.xlu0 %v1186, 110
        %v1309 = vpop.permute.xlu0 %1308
        %1310 = vrot.lane.b32.xlu0 %v1187, 110
        %v1311 = vpop.permute.xlu0 %1310
        %v1312 = vsel %vm530, %v1307, %v1309
        %v1313 = vsel %vm530, %v1309, %v1311
        %1319 = vrot.lane.b32.xlu0 %v1206, 96
        %v1320 = vpop.permute.xlu0 %1319
        %1321 = vrot.lane.b32.xlu0 %v1207, 96
        %v1322 = vpop.permute.xlu0 %1321
        %1323 = vrot.lane.b32.xlu0 %v1208, 96
        %v1324 = vpop.permute.xlu0 %1323
        %v1325 = vsel %vm554, %v1320, %v1322
        %v1326 = vsel %vm554, %v1322, %v1324
        %1332 = vrot.lane.b32.xlu0 %v1227, 95
        %v1333 = vpop.permute.xlu0 %1332
        %1334 = vrot.lane.b32.xlu0 %v1228, 95
        %v1335 = vpop.permute.xlu0 %1334
        %1336 = vrot.lane.b32.xlu0 %v1229, 95
        %v1337 = vpop.permute.xlu0 %1336
        %v1338 = vsel %vm578, %v1333, %v1335
        %v1339 = vsel %vm578, %v1335, %v1337
        %1345 = vrot.lane.b32.xlu0 %v1248, 94
        %v1346 = vpop.permute.xlu0 %1345
        %1347 = vrot.lane.b32.xlu0 %v1249, 94
        %v1348 = vpop.permute.xlu0 %1347
        %1349 = vrot.lane.b32.xlu0 %v1250, 94
        %v1350 = vpop.permute.xlu0 %1349
        %v1351 = vsel %vm602, %v1346, %v1348
        %v1352 = vsel %vm602, %v1348, %v1350
        %v1356 = vsel %vm994, %v1085, 0
        %v1359 = vsel %vm994, %v1086, 0
        %1361 = vmatprep.subr.mxu0 %v1102
        %1362 = vmatpush1.msra.mxu0 %v1101
        %1363 = vmatprep.subr.mxu0 %v1261
        %1364 = vmatpush1.msra.mxu0 %v1260
        %1365 = vmatprep.subr.mxu0 %v1274
        %1366 = vmatpush1.msra.mxu0 %v1273
        %1367 = vmatprep.subr.mxu0 %v1287
        %1368 = vmatpush1.msra.mxu0 %v1286
        %1369 = vmatprep.subr.mxu0 %v1300
        %1370 = vmatpush1.msra.mxu0 %v1299
        %1371 = vmatprep.subr.mxu0 %v1313
        %1372 = vmatpush1.msra.mxu0 %v1312
        %1373 = vmatprep.subr.mxu0 %v1326
        %1374 = vmatpush1.msra.mxu0 %v1325
        %1375 = vmatprep.subr.mxu0 %v1339
        %1376 = vmatpush1.msra.mxu0 %v1338
        %1377 = vmatprep.subr.mxu0 %v1352
        %1378 = vmatpush1.msra.mxu0 %v1351
        %1379 = vmatprep.subr.mxu0 %v999
        %1380 = vmatpush1.msra.mxu0 %v999
        %1381 = vmatprep.subr.mxu0 0.0
        %1382 = vmatpush1.msra.mxu0 0.0
        %1383 = vmatprep.subr.mxu0 0.0
        %1384 = vmatpush1.msra.mxu0 0.0
        %1385 = vmatprep.subr.mxu0 0.0
        %1386 = vmatpush1.msra.mxu0 0.0
        %1387 = vmatprep.subr.mxu0 0.0
        %1388 = vmatpush1.msra.mxu0 0.0
        %1389 = vmatprep.subr.mxu0 0.0
        %1390 = vmatpush1.msra.mxu0 0.0
        %1391 = vmatprep.subr.mxu0 0.0
        %1392 = vmatpush1.msra.mxu0 0.0
        %1393 = vmatprep.subr.mxu0 0.0
        %1394 = vmatpush1.msra.mxu0 0.0
        %1395 = vmatprep.subr.mxu0 0.0
        %1396 = vmatpush1.msra.mxu0 0.0
        %1397 = vmatprep.subr.mxu0 0.0
        %1398 = vmatpush1.msra.mxu0 0.0
        %1399 = vmatprep.subr.mxu0 0.0
        %1400 = vmatpush1.msra.mxu0 0.0
        %1401 = vmatprep.subr.mxu0 0.0
        %1402 = vmatpush1.msra.mxu0 0.0
        %1403 = vmatprep.subr.mxu0 0.0
        %1404 = vmatpush1.msra.mxu0 0.0
        %1405 = vmatprep.subr.mxu0 0.0
        %1406 = vmatpush1.msra.mxu0 0.0
        %1407 = vmatprep.subr.mxu0 0.0
        %1408 = vmatpush1.msra.mxu0 0.0
        %1409 = vmatprep.subr.mxu0 0.0
        %1410 = vmatpush1.msra.mxu0 0.0
        %1411 = vmatprep.subr.mxu0 0.0
        %1412 = vmatpush1.msra.mxu0 0.0
        %1413 = vmatprep.subr.mxu0 0.0
        %1414 = vmatpush1.msra.mxu0 0.0
        %1415 = vmatprep.subr.mxu0 0.0
        %1416 = vmatpush1.msra.mxu0 0.0
        %1417 = vmatprep.subr.mxu0 0.0
        %1418 = vmatpush1.msra.mxu0 0.0
        %1419 = vmatprep.subr.mxu0 0.0
        %1420 = vmatpush1.msra.mxu0 0.0
        %1421 = vmatprep.subr.mxu0 0.0
        %1422 = vmatpush1.msra.mxu0 0.0
        %1423 = vmatprep.subr.mxu0 0.0
        %1424 = vmatpush1.msra.mxu0 0.0
        %1425 = vmatprep.mubr.f32.mxu0 0.0
        %1426 = vmatmul.mubr.f32.gmra.mrb[0].mxu0 %v1356
        %v1427 = vpop.f32.mrb[0].mxu0
        %v1428 = vadd.f32 0.0, %v1427
        %v1429 = vpop.f32.mrb[0].mxu0
        %v1430 = vadd.f32 0.0, %v1429
        %1431 = vmatprep.mubr.f32.mxu0 0.0
        %1432 = vmatmul.mubr.f32.gmra.mrb[0].mxu0 %v1359
        %v1433 = vpop.f32.mrb[0].mxu0
        %v1434 = vadd.f32 0.0, %v1433
        %v1435 = vpop.f32.mrb[0].mxu0
        %v1436 = vadd.f32 0.0, %v1435
        %1437 = vdwg.mxu0
        %1442 = vrot.lane.b32.xlu0 %v1428, 17
        %v1443 = vpop.permute.xlu0 %1442
        %1444 = vrot.lane.b32.xlu0 %v1430, 17
        %v1445 = vpop.permute.xlu0 %1444
        %1446 = vrot.lane.b32.xlu0 %v1434, 17
        %v1447 = vpop.permute.xlu0 %1446
        %1448 = vrot.lane.b32.xlu0 %v1436, 17
        %v1449 = vpop.permute.xlu0 %1448
        %v1450 = vsel %vm310, %v1443, %v1445
        %v1451 = vsel %vm310, %v1447, %v1449
        %1458 = vst.msk [vmem:[#allocation2] sm:$0xff] %vm721, %v1443
        %1459 = vst [vmem:[#allocation2 + $0x8] sm:$0xff] %v1450
        %1460 = vst.msk [vmem:[#allocation2 + $0x10] sm:$0xff] %vm310, %v1445
        %1461 = vst.msk [vmem:[#allocation2 + $0x18] sm:$0xff] %vm721, %v1447
        %1462 = vst [vmem:[#allocation2 + $0x20] sm:$0xff] %v1451
        %1463 = vst.msk [vmem:[#allocation2 + $0x28] sm:$0xff] %vm310, %v1449
        %v1464 = vld [vmem:[%s5] sm:$0x3]
        %v1465 = vld [vmem:[#allocation2] sm:$0xff]
        %v1466 = vld [vmem:[#allocation2 + $0x8] sm:$0xff]
        %v1467 = vld [vmem:[#allocation2 + $0x18] sm:$0xff]
        %v1468 = vld [vmem:[#allocation2 + $0x20] sm:$0xff]
        %v1469 = vld [vmem:[#allocation6] ss:$8 sm:$0x3]
        %v1471 = vlaneseq
        %v1472 = vshrl.u32 %v1471, 7
        %v1473 = vsub.s32 0, %v1472
        %v1474 = vrot.slane %v1469, %v1473
        %v1475 = vlaneseq
        %v1476 = vshrl.u32 %v1475, 7
        %v1477 = vsub.s32 1, %v1476
        %v1478 = vrot.slane %v1469, %v1477
        %v1481 = vmul.f32 %v1465, %v1474
        %v1482 = vmul.f32 %v1466, %v1478
        %v1483 = vmul.f32 %v1467, %v1474
        %v1484 = vmul.f32 %v1468, %v1478
        %v1485 = vld [vmem:[#allocation2 + $0x10] sm:$0xff]
        %v1486 = vld [vmem:[#allocation2 + $0x28] sm:$0xff]
        %v1487 = vld [vmem:[%s334] ss:$8 sm:$0x3]
        %v1489 = vlaneseq
        %v1490 = vshrl.u32 %v1489, 7
        %v1491 = vsub.s32 0, %v1490
        %v1492 = vrot.slane %v1487, %v1491
        %v1493 = vlaneseq
        %v1494 = vshrl.u32 %v1493, 7
        %v1495 = vsub.s32 1, %v1494
        %v1496 = vrot.slane %v1487, %v1495
        %1497 = vrot.lane.b32.xlu0 %v1492, 1
        %v1498 = vpop.permute.xlu0 %1497
        %1499 = vrot.lane.b32.xlu0 %v1496, 1
        %v1500 = vpop.permute.xlu0 %1499
        %v1501 = vsel %vm340, %v1498, %v1500
        %v1505 = vmul.f32 %v1465, %v1498
        %v1506 = vmul.f32 %v1466, %v1501
        %v1507 = vmul.f32 %v1485, %v1500
        %v1508 = vmul.f32 %v1467, %v1498
        %v1509 = vmul.f32 %v1468, %v1501
        %v1510 = vmul.f32 %v1486, %v1500
        %v1511 = vld [vmem:[%s344] ss:$8 sm:$0x3]
        %v1513 = vlaneseq
        %v1514 = vshrl.u32 %v1513, 7
        %v1515 = vsub.s32 0, %v1514
        %v1516 = vrot.slane %v1511, %v1515
        %v1517 = vlaneseq
        %v1518 = vshrl.u32 %v1517, 7
        %v1519 = vsub.s32 1, %v1518
        %v1520 = vrot.slane %v1511, %v1519
        %1521 = vrot.lane.b32.xlu0 %v1516, 2
        %v1522 = vpop.permute.xlu0 %1521
        %1523 = vrot.lane.b32.xlu0 %v1520, 2
        %v1524 = vpop.permute.xlu0 %1523
        %v1525 = vsel %vm350, %v1522, %v1524
        %v1529 = vmul.f32 %v1465, %v1522
        %v1530 = vmul.f32 %v1466, %v1525
        %v1531 = vmul.f32 %v1485, %v1524
        %v1532 = vmul.f32 %v1467, %v1522
        %v1533 = vmul.f32 %v1468, %v1525
        %v1534 = vmul.f32 %v1486, %v1524
        %v1535 = vld [vmem:[%s354] ss:$8 sm:$0x3]
        %v1537 = vlaneseq
        %v1538 = vshrl.u32 %v1537, 7
        %v1539 = vsub.s32 0, %v1538
        %v1540 = vrot.slane %v1535, %v1539
        %v1541 = vlaneseq
        %v1542 = vshrl.u32 %v1541, 7
        %v1543 = vsub.s32 1, %v1542
        %v1544 = vrot.slane %v1535, %v1543
        %1545 = vrot.lane.b32.xlu0 %v1540, 16
        %v1546 = vpop.permute.xlu0 %1545
        %1547 = vrot.lane.b32.xlu0 %v1544, 16
        %v1548 = vpop.permute.xlu0 %1547
        %v1549 = vsel %vm360, %v1546, %v1548
        %v1553 = vmul.f32 %v1465, %v1546
        %v1554 = vmul.f32 %v1466, %v1549
        %v1555 = vmul.f32 %v1485, %v1548
        %v1556 = vmul.f32 %v1467, %v1546
        %v1557 = vmul.f32 %v1468, %v1549
        %v1558 = vmul.f32 %v1486, %v1548
        %v1559 = vld [vmem:[%s364] ss:$8 sm:$0x3]
        %v1561 = vlaneseq
        %v1562 = vshrl.u32 %v1561, 7
        %v1563 = vsub.s32 0, %v1562
        %v1564 = vrot.slane %v1559, %v1563
        %v1565 = vlaneseq
        %v1566 = vshrl.u32 %v1565, 7
        %v1567 = vsub.s32 1, %v1566
        %v1568 = vrot.slane %v1559, %v1567
        %1569 = vrot.lane.b32.xlu0 %v1564, 18
        %v1570 = vpop.permute.xlu0 %1569
        %1571 = vrot.lane.b32.xlu0 %v1568, 18
        %v1572 = vpop.permute.xlu0 %1571
        %v1573 = vsel %vm370, %v1570, %v1572
        %v1577 = vmul.f32 %v1465, %v1570
        %v1578 = vmul.f32 %v1466, %v1573
        %v1579 = vmul.f32 %v1485, %v1572
        %v1580 = vmul.f32 %v1467, %v1570
        %v1581 = vmul.f32 %v1468, %v1573
        %v1582 = vmul.f32 %v1486, %v1572
        %v1583 = vld [vmem:[%s374] ss:$8 sm:$0x3]
        %v1585 = vlaneseq
        %v1586 = vshrl.u32 %v1585, 7
        %v1587 = vsub.s32 0, %v1586
        %v1588 = vrot.slane %v1583, %v1587
        %v1589 = vlaneseq
        %v1590 = vshrl.u32 %v1589, 7
        %v1591 = vsub.s32 1, %v1590
        %v1592 = vrot.slane %v1583, %v1591
        %1593 = vrot.lane.b32.xlu0 %v1588, 32
        %v1594 = vpop.permute.xlu0 %1593
        %1595 = vrot.lane.b32.xlu0 %v1592, 32
        %v1596 = vpop.permute.xlu0 %1595
        %v1597 = vsel %vm380, %v1594, %v1596
        %v1601 = vmul.f32 %v1465, %v1594
        %v1602 = vmul.f32 %v1466, %v1597
        %v1603 = vmul.f32 %v1485, %v1596
        %v1604 = vmul.f32 %v1467, %v1594
        %v1605 = vmul.f32 %v1468, %v1597
        %v1606 = vmul.f32 %v1486, %v1596
        %v1607 = vld [vmem:[%s384] ss:$8 sm:$0x3]
        %v1609 = vlaneseq
        %v1610 = vshrl.u32 %v1609, 7
        %v1611 = vsub.s32 0, %v1610
        %v1612 = vrot.slane %v1607, %v1611
        %v1613 = vlaneseq
        %v1614 = vshrl.u32 %v1613, 7
        %v1615 = vsub.s32 1, %v1614
        %v1616 = vrot.slane %v1607, %v1615
        %1617 = vrot.lane.b32.xlu0 %v1612, 33
        %v1618 = vpop.permute.xlu0 %1617
        %1619 = vrot.lane.b32.xlu0 %v1616, 33
        %v1620 = vpop.permute.xlu0 %1619
        %v1621 = vsel %vm390, %v1618, %v1620
        %v1625 = vmul.f32 %v1465, %v1618
        %v1626 = vmul.f32 %v1466, %v1621
        %v1627 = vmul.f32 %v1485, %v1620
        %v1628 = vmul.f32 %v1467, %v1618
        %v1629 = vmul.f32 %v1468, %v1621
        %v1630 = vmul.f32 %v1486, %v1620
        %v1631 = vld [vmem:[%s394] ss:$8 sm:$0x3]
        %v1633 = vlaneseq
        %v1634 = vshrl.u32 %v1633, 7
        %v1635 = vsub.s32 0, %v1634
        %v1636 = vrot.slane %v1631, %v1635
        %v1637 = vlaneseq
        %v1638 = vshrl.u32 %v1637, 7
        %v1639 = vsub.s32 1, %v1638
        %v1640 = vrot.slane %v1631, %v1639
        %1641 = vrot.lane.b32.xlu0 %v1636, 34
        %v1642 = vpop.permute.xlu0 %1641
        %1643 = vrot.lane.b32.xlu0 %v1640, 34
        %v1644 = vpop.permute.xlu0 %1643
        %v1645 = vsel %vm400, %v1642, %v1644
        %v1649 = vmul.f32 %v1465, %v1642
        %v1650 = vmul.f32 %v1466, %v1645
        %v1651 = vmul.f32 %v1485, %v1644
        %v1652 = vmul.f32 %v1467, %v1642
        %v1653 = vmul.f32 %v1468, %v1645
        %v1654 = vmul.f32 %v1486, %v1644
        %1661 = vrot.lane.b32.xlu0 %v1505, 127
        %v1662 = vpop.permute.xlu0 %1661
        %1663 = vrot.lane.b32.xlu0 %v1506, 127
        %v1664 = vpop.permute.xlu0 %1663
        %1665 = vrot.lane.b32.xlu0 %v1507, 127
        %v1666 = vpop.permute.xlu0 %1665
        %1667 = vrot.lane.b32.xlu0 %v1508, 127
        %v1668 = vpop.permute.xlu0 %1667
        %1669 = vrot.lane.b32.xlu0 %v1509, 127
        %v1670 = vpop.permute.xlu0 %1669
        %1671 = vrot.lane.b32.xlu0 %v1510, 127
        %v1672 = vpop.permute.xlu0 %1671
        %v1673 = vsel %vm434, %v1662, %v1664
        %v1674 = vsel %vm434, %v1664, %v1666
        %v1675 = vsel %vm434, %v1668, %v1670
        %v1676 = vsel %vm434, %v1670, %v1672
        %1687 = vrot.lane.b32.xlu0 %v1529, 126
        %v1688 = vpop.permute.xlu0 %1687
        %1689 = vrot.lane.b32.xlu0 %v1530, 126
        %v1690 = vpop.permute.xlu0 %1689
        %1691 = vrot.lane.b32.xlu0 %v1531, 126
        %v1692 = vpop.permute.xlu0 %1691
        %1693 = vrot.lane.b32.xlu0 %v1532, 126
        %v1694 = vpop.permute.xlu0 %1693
        %1695 = vrot.lane.b32.xlu0 %v1533, 126
        %v1696 = vpop.permute.xlu0 %1695
        %1697 = vrot.lane.b32.xlu0 %v1534, 126
        %v1698 = vpop.permute.xlu0 %1697
        %v1699 = vsel %vm458, %v1688, %v1690
        %v1700 = vsel %vm458, %v1690, %v1692
        %v1701 = vsel %vm458, %v1694, %v1696
        %v1702 = vsel %vm458, %v1696, %v1698
        %1713 = vrot.lane.b32.xlu0 %v1553, 112
        %v1714 = vpop.permute.xlu0 %1713
        %1715 = vrot.lane.b32.xlu0 %v1554, 112
        %v1716 = vpop.permute.xlu0 %1715
        %1717 = vrot.lane.b32.xlu0 %v1555, 112
        %v1718 = vpop.permute.xlu0 %1717
        %1719 = vrot.lane.b32.xlu0 %v1556, 112
        %v1720 = vpop.permute.xlu0 %1719
        %1721 = vrot.lane.b32.xlu0 %v1557, 112
        %v1722 = vpop.permute.xlu0 %1721
        %1723 = vrot.lane.b32.xlu0 %v1558, 112
        %v1724 = vpop.permute.xlu0 %1723
        %v1725 = vsel %vm482, %v1714, %v1716
        %v1726 = vsel %vm482, %v1716, %v1718
        %v1727 = vsel %vm482, %v1720, %v1722
        %v1728 = vsel %vm482, %v1722, %v1724
        %1739 = vrot.lane.b32.xlu0 %v1465, 111
        %v1740 = vpop.permute.xlu0 %1739
        %1741 = vrot.lane.b32.xlu0 %v1466, 111
        %v1742 = vpop.permute.xlu0 %1741
        %1743 = vrot.lane.b32.xlu0 %v1485, 111
        %v1744 = vpop.permute.xlu0 %1743
        %1745 = vrot.lane.b32.xlu0 %v1467, 111
        %v1746 = vpop.permute.xlu0 %1745
        %1747 = vrot.lane.b32.xlu0 %v1468, 111
        %v1748 = vpop.permute.xlu0 %1747
        %1749 = vrot.lane.b32.xlu0 %v1486, 111
        %v1750 = vpop.permute.xlu0 %1749
        %v1751 = vsel %vm506, %v1740, %v1742
        %v1752 = vsel %vm506, %v1742, %v1744
        %v1753 = vsel %vm506, %v1746, %v1748
        %v1754 = vsel %vm506, %v1748, %v1750
        %1765 = vrot.lane.b32.xlu0 %v1577, 110
        %v1766 = vpop.permute.xlu0 %1765
        %1767 = vrot.lane.b32.xlu0 %v1578, 110
        %v1768 = vpop.permute.xlu0 %1767
        %1769 = vrot.lane.b32.xlu0 %v1579, 110
        %v1770 = vpop.permute.xlu0 %1769
        %1771 = vrot.lane.b32.xlu0 %v1580, 110
        %v1772 = vpop.permute.xlu0 %1771
        %1773 = vrot.lane.b32.xlu0 %v1581, 110
        %v1774 = vpop.permute.xlu0 %1773
        %1775 = vrot.lane.b32.xlu0 %v1582, 110
        %v1776 = vpop.permute.xlu0 %1775
        %v1777 = vsel %vm530, %v1766, %v1768
        %v1778 = vsel %vm530, %v1768, %v1770
        %v1779 = vsel %vm530, %v1772, %v1774
        %v1780 = vsel %vm530, %v1774, %v1776
        %1791 = vrot.lane.b32.xlu0 %v1601, 96
        %v1792 = vpop.permute.xlu0 %1791
        %1793 = vrot.lane.b32.xlu0 %v1602, 96
        %v1794 = vpop.permute.xlu0 %1793
        %1795 = vrot.lane.b32.xlu0 %v1603, 96
        %v1796 = vpop.permute.xlu0 %1795
        %1797 = vrot.lane.b32.xlu0 %v1604, 96
        %v1798 = vpop.permute.xlu0 %1797
        %1799 = vrot.lane.b32.xlu0 %v1605, 96
        %v1800 = vpop.permute.xlu0 %1799
        %1801 = vrot.lane.b32.xlu0 %v1606, 96
        %v1802 = vpop.permute.xlu0 %1801
        %v1803 = vsel %vm554, %v1792, %v1794
        %v1804 = vsel %vm554, %v1794, %v1796
        %v1805 = vsel %vm554, %v1798, %v1800
        %v1806 = vsel %vm554, %v1800, %v1802
        %1817 = vrot.lane.b32.xlu0 %v1625, 95
        %v1818 = vpop.permute.xlu0 %1817
        %1819 = vrot.lane.b32.xlu0 %v1626, 95
        %v1820 = vpop.permute.xlu0 %1819
        %1821 = vrot.lane.b32.xlu0 %v1627, 95
        %v1822 = vpop.permute.xlu0 %1821
        %1823 = vrot.lane.b32.xlu0 %v1628, 95
        %v1824 = vpop.permute.xlu0 %1823
        %1825 = vrot.lane.b32.xlu0 %v1629, 95
        %v1826 = vpop.permute.xlu0 %1825
        %1827 = vrot.lane.b32.xlu0 %v1630, 95
        %v1828 = vpop.permute.xlu0 %1827
        %v1829 = vsel %vm578, %v1818, %v1820
        %v1830 = vsel %vm578, %v1820, %v1822
        %v1831 = vsel %vm578, %v1824, %v1826
        %v1832 = vsel %vm578, %v1826, %v1828
        %1843 = vrot.lane.b32.xlu0 %v1649, 94
        %v1844 = vpop.permute.xlu0 %1843
        %1845 = vrot.lane.b32.xlu0 %v1650, 94
        %v1846 = vpop.permute.xlu0 %1845
        %1847 = vrot.lane.b32.xlu0 %v1651, 94
        %v1848 = vpop.permute.xlu0 %1847
        %1849 = vrot.lane.b32.xlu0 %v1652, 94
        %v1850 = vpop.permute.xlu0 %1849
        %1851 = vrot.lane.b32.xlu0 %v1653, 94
        %v1852 = vpop.permute.xlu0 %1851
        %1853 = vrot.lane.b32.xlu0 %v1654, 94
        %v1854 = vpop.permute.xlu0 %1853
        %v1855 = vsel %vm602, %v1844, %v1846
        %v1856 = vsel %vm602, %v1846, %v1848
        %v1857 = vsel %vm602, %v1850, %v1852
        %v1858 = vsel %vm602, %v1852, %v1854
        %v1864 = vlaneseq
        %v1865 = vshrl.u32 %v1864, 7
        %v1866 = vsub.s32 0, %v1865
        %v1867 = vrot.slane %v1464, %v1866
        %v1868 = vlaneseq
        %v1869 = vshrl.u32 %v1868, 7
        %v1870 = vsub.s32 1, %v1869
        %v1871 = vrot.slane %v1464, %v1870
        %v1873 = vsel %vm310, %v1871, 0
        %1875 = vmatprep.subr.mxu0 %v1482
        %1876 = vmatpush1.msra.mxu0 %v1481
        %1877 = vmatprep.subr.mxu0 %v1484
        %1878 = vmatpush1.msra.mxu0 %v1483
        %1879 = vmatprep.subr.mxu0 %v1674
        %1880 = vmatpush1.msra.mxu0 %v1673
        %1881 = vmatprep.subr.mxu0 %v1676
        %1882 = vmatpush1.msra.mxu0 %v1675
        %1883 = vmatprep.subr.mxu0 %v1700
        %1884 = vmatpush1.msra.mxu0 %v1699
        %1885 = vmatprep.subr.mxu0 %v1702
        %1886 = vmatpush1.msra.mxu0 %v1701
        %1887 = vmatprep.subr.mxu0 %v1726
        %1888 = vmatpush1.msra.mxu0 %v1725
        %1889 = vmatprep.subr.mxu0 %v1728
        %1890 = vmatpush1.msra.mxu0 %v1727
        %1891 = vmatprep.subr.mxu0 %v1752
        %1892 = vmatpush1.msra.mxu0 %v1751
        %1893 = vmatprep.subr.mxu0 %v1754
        %1894 = vmatpush1.msra.mxu0 %v1753
        %1895 = vmatprep.subr.mxu0 %v1778
        %1896 = vmatpush1.msra.mxu0 %v1777
        %1897 = vmatprep.subr.mxu0 %v1780
        %1898 = vmatpush1.msra.mxu0 %v1779
        %1899 = vmatprep.subr.mxu0 %v1804
        %1900 = vmatpush1.msra.mxu0 %v1803
        %1901 = vmatprep.subr.mxu0 %v1806
        %1902 = vmatpush1.msra.mxu0 %v1805
        %1903 = vmatprep.subr.mxu0 %v1830
        %1904 = vmatpush1.msra.mxu0 %v1829
        %1905 = vmatprep.subr.mxu0 %v1832
        %1906 = vmatpush1.msra.mxu0 %v1831
        %1907 = vmatprep.subr.mxu0 %v1856
        %1908 = vmatpush1.msra.mxu0 %v1855
        %1909 = vmatprep.subr.mxu0 %v1858
        %1910 = vmatpush1.msra.mxu0 %v1857
        %1911 = vmatprep.subr.mxu0 %v999
        %1912 = vmatpush1.msra.mxu0 %v999
        %1913 = vmatprep.subr.mxu0 0.0
        %1914 = vmatpush1.msra.mxu0 0.0
        %1915 = vmatprep.subr.mxu0 0.0
        %1916 = vmatpush1.msra.mxu0 0.0
        %1917 = vmatprep.subr.mxu0 0.0
        %1918 = vmatpush1.msra.mxu0 0.0
        %1919 = vmatprep.subr.mxu0 0.0
        %1920 = vmatpush1.msra.mxu0 0.0
        %1921 = vmatprep.subr.mxu0 0.0
        %1922 = vmatpush1.msra.mxu0 0.0
        %1923 = vmatprep.subr.mxu0 0.0
        %1924 = vmatpush1.msra.mxu0 0.0
        %1925 = vmatprep.subr.mxu0 0.0
        %1926 = vmatpush1.msra.mxu0 0.0
        %1927 = vmatprep.subr.mxu0 0.0
        %1928 = vmatpush1.msra.mxu0 0.0
        %1929 = vmatprep.subr.mxu0 0.0
        %1930 = vmatpush1.msra.mxu0 0.0
        %1931 = vmatprep.subr.mxu0 0.0
        %1932 = vmatpush1.msra.mxu0 0.0
        %1933 = vmatprep.subr.mxu0 0.0
        %1934 = vmatpush1.msra.mxu0 0.0
        %1935 = vmatprep.subr.mxu0 0.0
        %1936 = vmatpush1.msra.mxu0 0.0
        %1937 = vmatprep.subr.mxu0 0.0
        %1938 = vmatpush1.msra.mxu0 0.0
        %1939 = vmatprep.mubr.f32.mxu0 %v1873
        %1940 = vmatmul.mubr.f32.gmra.mrb[0].mxu0 %v1867
        %v1941 = vpop.f32.mrb[0].mxu0
        %v1942 = vadd.f32 0.0, %v1941
        %v1943 = vpop.f32.mrb[0].mxu0
        %v1944 = vadd.f32 0.0, %v1943
        %1945 = vdwg.mxu0
        %v1948 = vcombine.low %v1942, %v1944
        %v1950 = vunpack.c.l.s4 1966171168
        %v1951 = vunpack.c.0.s8 %v1950
        %v1952 = vlaneseq
        %v1953 = vshrl.u32 %v1952, 7
        %v1954 = vsub.s32 %v1951, %v1953
        %v1955 = vrot.slane %v1948, %v1954
        %v1957 = vunpack.c.l.s4 1966171168
        %v1958 = vunpack.c.0.s8 %v1957
        %v1959 = vlaneseq
        %v1960 = vshrl.u32 %v1959, 7
        %v1961 = vsub.s32 %v1958, %v1960
        %v1962 = vrot.slane %v1955, %v1961
        %vm1964 = vcmp.ge.s32.totalorder %v323, 0
        %vm1965 = vcmp.lt.s32.totalorder %v323, 256
        %vm1966 = vmand %vm1964, %vm1965
        %1967 = vst.msk [vmem:[%s307] sm:$0x3] %vm1966, %v1962
        %s1968 = sand.u32 %s164, 1
        %s1969 = scalar_lea.sflag [#allocation5], %s1968
        %s1970 = sand.u32 %s164, 1
        %s1971 = smul.addr %s1970, 2
        %s1972 = scalar_lea.vmem [#allocation11], %s1971
        // Predicated region
        $region61: #{tpu_custom_call.1} parent=43 // pred_check
          %p1973 = pneg %p174
        $region62: #{tpu_custom_call.1} parent=43 // pred_check_branch
          %1975 = sbr.rel (%p1973) target = $region64
        $region63: #{tpu_custom_call.1} parent=43 // pred_region
          %s1976 = smul.u32 2, %s25
          %s1978 = ssub.s32 32, 32
          %1979 = vsyncadd %s1969, %s1978
          %s1980 = smul.addr %s1976, 16
          %s1981 = scalar_lea.hbm %s6, %s1980
          %s1983 = sshll.u32 %s1972, 4
          %s1984 = int_to_ptr.vmem [resolvable:$true] %s1983
          %1986 = dma.vmem_to_hbm [thread:$0]  %s1984, 32, %s1981, %s1969
        $region64: #{tpu_custom_call.1} parent=43 // pred_fallthru
          _
      $region44: #{tpu_custom_call.1} parent=5 // pred_fallthru
        _
      %p1987 = scmp.le.s32.totalorder 2, %s20
      // Predicated region
      $region65: #{tpu_custom_call.1} parent=5 // pred_check
        %p1988 = pneg %p1987
      $region66: #{tpu_custom_call.1} parent=5 // pred_check_branch
        %1990 = sbr.rel (%p1988) target = $region68
      $region67: #{tpu_custom_call.1} parent=5 // pred_region
        %s1991 = ssub.s32 %s20, 2
        // Predicated region
        $region69: #{tpu_custom_call.1} parent=67 // pred_check
          %p1992 = pneg %p180
        $region70: #{tpu_custom_call.1} parent=67 // pred_check_branch
          %1994 = sbr.rel (%p1992) target = $region72
        $region71: #{tpu_custom_call.1} parent=67 // pred_region
          %s1995 = sand.u32 %s165, 1
          %s1996 = scalar_lea.sflag [#allocation5], %s1995
          %s1997 = sand.u32 %s165, 1
          %s1998 = smul.addr %s1997, 2
          %s1999 = scalar_lea.vmem [#allocation11], %s1998
          %2000 = dma.done %s1996, 32
        $region72: #{tpu_custom_call.1} parent=67 // pred_fallthru
          _
      $region68: #{tpu_custom_call.1} parent=5 // pred_fallthru
        _
    $region6: #{tpu_custom_call.1} parent=1 // loop_footer
      %s24 = sadd.s32 1, %s20
    $region7: #{tpu_custom_call.1} parent=1 // loop_footer_branch
      %19 = sbr.rel target = $region3
    $region8: #{tpu_custom_call.1} parent=1 // loop_exit
      _
    %2001 = vsyncpa [#allocation4], 1
    %s2002 = scalar_lea.sflag [#allocation4], 1
    %2003 = vsyncpa %s2002, 1
    %2004 = vsyncpa [#allocation7], 1
    %2005 = vsyncpa [#allocation10], 1
    %2006 = vsyncpa [#allocation5], 1
    %s2007 = scalar_lea.sflag [#allocation5], 1
    %2008 = vsyncpa %s2007, 1

</llo_original>
